<compile_context>
chip_gen: v7x
topology: tpu7x:2x2x1
jax: 0.10.0
libtpu: 0.0.40
codegen_flags: <defaults>
</compile_context>

<pallas_src>
import numpy as np

import jax
import jax.numpy as jnp
from jax.experimental import pallas as pl
from jax.experimental.pallas import tpu as pltpu


# Network constants (implied by fc1 in_features=320 = 20*4*4 -> 28x28 input).
_K = 5               # conv kernel size
_C1, _C2 = 10, 20    # conv output channels
_H_IN = 28           # input spatial size (1 input channel)
_P1 = 12             # pooled spatial after stage 1
_P2 = 4              # pooled spatial after stage 2
_FC1_OUT = 50
_NCLASS = 10
_LANE = 128          # lane padding for all channel*col layouts


# ----------------------------------------------------------------------------
# Fused whole-network kernel (one grid step == BT batch elements)
# ----------------------------------------------------------------------------
def _net_kernel(x_ref, w1_ref, b1_ref, w2_ref, b2_ref,
                g_ref, bf1_ref, wf2_ref, bf2_ref, o_ref):
    f32 = jnp.float32
    bf16 = jnp.bfloat16

    x = x_ref[...]                                   # (BT, 4, 7, 28) bf16
    bt = x.shape[0]

    # ---- conv1 + bias + 2x2 max-pool + ReLU : ONE MXU matmul ----------------
    # X rows: 4 blocks of 6; block q, row m  <->  conv1 output row 4*m + q.
    # X lanes: 5 kh-bands of 28 input columns (K = 140).
    blocks = []
    for q in range(4):
        bands = []
        for kh in range(_K):
            s = q + kh                               # input row = 4*m + s
            bands.append(x[:, s % 4, s // 4:s // 4 + 6, :])        # (BT, 6, 28)
        blocks.append(jnp.concatenate(bands, axis=-1))             # (BT, 6, 140)
    xc1 = jnp.concatenate(blocks, axis=1)                          # (BT, 24, 140)

    # Collapse leading dims (24 % 8 == 0 -> layout-trivial) into one matmul.
    r1 = jnp.dot(xc1.reshape(bt * 24, _K * _H_IN), w1_ref[...],
                 preferred_element_type=f32).reshape(bt, 24, 2 * _LANE)
    c1 = jnp.maximum(r1[:, :, :_LANE], r1[:, :, _LANE:])           # width pool
    p1 = jnp.concatenate(
        [jnp.maximum(c1[:, 0:6, :], c1[:, 6:12, :]),     # pooled rows 0,2,..,10
         jnp.maximum(c1[:, 12:18, :], c1[:, 18:24, :])], # pooled rows 1,3,..,11
        axis=1)                                                    # (BT, 12, 128)
    a1 = jnp.maximum(p1 + b1_ref[...], 0.0).astype(bf16)

    # ---- conv2 + bias + 2x2 max-pool + ReLU : ONE MXU matmul ----------------
    # a1 row p: p<6 -> pooled row 2p ; p>=6 -> pooled row 2(p-6)+1, so every
    # kh-band below is a unit-stride 4-row slice (K = 5*128 = 640).
    SE = (0, 6, 1, 7, 2)        # band starts for even conv2 output rows (0,2,4,6)
    SO = (6, 1, 7, 2, 8)        # band starts for odd  conv2 output rows (1,3,5,7)
    xe = jnp.concatenate([a1[:, SE[kh]:SE[kh] + 4, :] for kh in range(_K)], axis=-1)
    xo = jnp.concatenate([a1[:, SO[kh]:SO[kh] + 4, :] for kh in range(_K)], axis=-1)
    xc2 = jnp.concatenate([xe, xo], axis=1)                        # (BT, 8, 640)

    r2 = jnp.dot(xc2.reshape(bt * 8, _K * _LANE), w2_ref[...],
                 preferred_element_type=f32).reshape(bt, 8, 2 * _LANE)
    c2 = jnp.maximum(r2[:, :, :_LANE], r2[:, :, _LANE:])           # width pool
    p2 = jnp.maximum(c2[:, 0:4, :], c2[:, 4:8, :])                 # height pool
    a2 = jnp.maximum(p2 + b2_ref[...], 0.0).astype(bf16)           # (BT, 4, 128)

    # ---- fc1 (NCHW flatten folded into weights) + ReLU : ONE matmul ---------
    a2f = jnp.concatenate([a2[:, r, :] for r in range(_P2)], axis=-1)   # (BT, 512)
    h = jnp.dot(a2f, g_ref[...], preferred_element_type=f32)           # (BT, 128)
    h = jnp.maximum(h + bf1_ref[...], 0.0).astype(bf16)

    # ---- fc2 + softmax(dim=1), lane-dense 128-wide output -------------------
    logits = jnp.dot(h, wf2_ref[...], preferred_element_type=f32) + bf2_ref[...]
    m = jnp.max(logits, axis=-1, keepdims=True)
    e = jnp.exp(logits - m)
    s = jnp.sum(e, axis=-1, keepdims=True)
    if hasattr(pl, "reciprocal"):
        probs = e * pl.reciprocal(s, approx=True)
    else:
        probs = e / s
    o_ref[...] = probs.astype(o_ref.dtype)


# ----------------------------------------------------------------------------
# One-time host-side repack of PyTorch-layout weights for the fused kernel
# ----------------------------------------------------------------------------
def fold_params(params):
    w1 = np.asarray(params["conv1_w"], np.float32)     # (10, 1, 5, 5)
    b1 = np.asarray(params["conv1_b"], np.float32)
    w2 = np.asarray(params["conv2_w"], np.float32)     # (20, 10, 5, 5)
    b2 = np.asarray(params["conv2_b"], np.float32)
    wf1 = np.asarray(params["fc1_w"], np.float32)      # (320, 50)  (in, out)
    bf1 = np.asarray(params["fc1_b"], np.float32)
    wf2 = np.asarray(params["fc2_w"], np.float32)      # (50, 10)   (in, out)
    bf2 = np.asarray(params["fc2_b"], np.float32)

    # conv1: K = 5 kh-bands x 28 input cols ; N = 2 width-parities x 128 lanes,
    # lane = chan*12 + pooled_col.
    W1 = np.zeros((_K * _H_IN, 2 * _LANE), np.float32)
    for kh in range(_K):
        for kw in range(_K):
            for wp in range(2):
                for jp in range(_P1):
                    c = 2 * jp + wp + kw
                    W1[kh * _H_IN + c,
                       wp * _LANE + np.arange(_C1) * _P1 + jp] = w1[:, 0, kh, kw]

    # conv2: K = 5 kh-bands x 128 a1-lanes (ci*12 + col) ; N = 2 width-parities
    # x 128 lanes, lane = co*4 + pooled_col.
    W2 = np.zeros((_K * _LANE, 2 * _LANE), np.float32)
    for kh in range(_K):
        for kw in range(_K):
            for wp in range(2):
                for jp in range(_P2):
                    c = 2 * jp + wp + kw
                    rows = kh * _LANE + np.arange(_C1) * _P1 + c
                    cols = wp * _LANE + np.arange(_C2) * _P2 + jp
                    W2[np.ix_(rows, cols)] = w2[:, :, kh, kw].T     # (ci, co)

    b1r = np.zeros((1, _LANE), np.float32)
    b1r[0, :_C1 * _P1] = np.repeat(b1, _P1)
    b2r = np.zeros((1, _LANE), np.float32)
    b2r[0, :_C2 * _P2] = np.repeat(b2, _P2)

    # fc1: fold the PyTorch NCHW flatten (idx = co*16 + row*4 + col) into one
    # (4*128, 128) slab consuming the lane-concat of a2's 4 rows; pad 50 -> 128.
    G = np.zeros((_P2 * _LANE, _LANE), np.float32)
    for r in range(_P2):
        for co in range(_C2):
            for col in range(_P2):
                G[r * _LANE + co * _P2 + col, :_FC1_OUT] = wf1[co * 16 + r * 4 + col, :]
    bf1p = np.zeros((1, _LANE), np.float32)
    bf1p[0, :_FC1_OUT] = bf1

    # fc2: lane-dense 128x128 slab; padded logit lanes get a large finite
    # negative bias so softmax sends them to ~0 without NaN risk.
    WF2 = np.zeros((_LANE, _LANE), np.float32)
    WF2[:_FC1_OUT, :_NCLASS] = wf2
    bf2p = np.full((1, _LANE), -1e30, np.float32)
    bf2p[0, :_NCLASS] = bf2

    bf16 = jnp.bfloat16
    return {
        "W1": jnp.asarray(W1, bf16), "b1": jnp.asarray(b1r),
        "W2": jnp.asarray(W2, bf16), "b2": jnp.asarray(b2r),
        "G": jnp.asarray(G, bf16), "bf1": jnp.asarray(bf1p),
        "WF2": jnp.asarray(WF2, bf16), "bf2": jnp.asarray(bf2p),
    }


def _round_up(n, m):
    return ((n + m - 1) // m) * m


def _pallas_kwargs():
    cp_cls = getattr(pltpu, "CompilerParams", None)
    if cp_cls is None:
        cp_cls = getattr(pltpu, "TPUCompilerParams", None)
    if cp_cls is None:
        return {}
    try:
        cp = cp_cls(dimension_semantics=("parallel",),
                    vmem_limit_bytes=32 * 1024 * 1024)
    except TypeError:
        cp = cp_cls(dimension_semantics=("parallel",))
    return {"compiler_params": cp}


# ----------------------------------------------------------------------------
# Forward pass wrapper: one pallas_call for the whole network
# ----------------------------------------------------------------------------
def net_forward(x, folded):
    """x: (B, 1, 28, 28) float32 -> (B, 10) softmax probabilities."""
    B = x.shape[0]
    # Row-deinterleave (mod 4) so every in-kernel band slice is unit-stride:
    # xr[b, q, m, c] = x[b, 0, 4*m + q, c].  Pure layout plumbing; bf16 halves DMA.
    xr = x.reshape(B, _H_IN, _H_IN).reshape(B, 7, 4, _H_IN)
    xr = jnp.transpose(xr, (0, 2, 1, 3)).astype(jnp.bfloat16)

    BT = min(128, _round_up(B, 8))                   # batch tile per grid step
    B_pad = _round_up(B, BT)
    if B_pad != B:
        xr = jnp.pad(xr, ((0, B_pad - B), (0, 0), (0, 0), (0, 0)))

    w_specs = [
        pl.BlockSpec(folded["W1"].shape, lambda b: (0, 0)),
        pl.BlockSpec(folded["b1"].shape, lambda b: (0, 0)),
        pl.BlockSpec(folded["W2"].shape, lambda b: (0, 0)),
        pl.BlockSpec(folded["b2"].shape, lambda b: (0, 0)),
        pl.BlockSpec(folded["G"].shape, lambda b: (0, 0)),
        pl.BlockSpec(folded["bf1"].shape, lambda b: (0, 0)),
        pl.BlockSpec(folded["WF2"].shape, lambda b: (0, 0)),
        pl.BlockSpec(folded["bf2"].shape, lambda b: (0, 0)),
    ]
    out = pl.pallas_call(
        _net_kernel,
        out_shape=jax.ShapeDtypeStruct((B_pad, _LANE), jnp.float32),
        grid=(B_pad // BT,),
        in_specs=[pl.BlockSpec((BT, 4, 7, _H_IN), lambda b: (b, 0, 0, 0))] + w_specs,
        out_specs=pl.BlockSpec((BT, _LANE), lambda b: (b, 0)),
        **_pallas_kwargs(),
    )(xr, folded["W1"], folded["b1"], folded["W2"], folded["b2"],
      folded["G"], folded["bf1"], folded["WF2"], folded["bf2"])
    return out[:B, :_NCLASS]


# ----------------------------------------------------------------------------
# Params init (fc weights stored as (in, out))
# ----------------------------------------------------------------------------
def init_params(key):
    ks = jax.random.split(key, 8)

    def u(k, shape, fan_in):
        bound = 1.0 / jnp.sqrt(fan_in)
        return jax.random.uniform(k, shape, jnp.float32, -bound, bound)

    return {
        "conv1_w": u(ks[0], (10, 1, 5, 5), 1 * 5 * 5),
        "conv1_b": u(ks[1], (10,), 1 * 5 * 5),
        "conv2_w": u(ks[2], (20, 10, 5, 5), 10 * 5 * 5),
        "conv2_b": u(ks[3], (20,), 10 * 5 * 5),
        "fc1_w": u(ks[4], (320, 50), 320),
        "fc1_b": u(ks[5], (50,), 320),
        "fc2_w": u(ks[6], (50, 10), 50),
        "fc2_b": u(ks[7], (10,), 50),
    }


# ----------------------------------------------------------------------------
# Pure-JAX (XLA) reference of Net.forward (eval mode) for correctness checking
# ----------------------------------------------------------------------------
def reference_forward(x, params):
    def conv(h, w, b):
        y = jax.lax.conv_general_dilated(
            h, w, window_strides=(1, 1), padding="VALID",
            dimension_numbers=("NCHW", "OIHW", "NCHW"))
        return y + b[None, :, None, None]

    def pool(h):
        return jax.lax.reduce_window(h, -jnp.inf, jax.lax.max,
                                     (1, 1, 2, 2), (1, 1, 2, 2), "VALID")

    h = jax.nn.relu(pool(conv(x, params["conv1_w"], params["conv1_b"])))
    h = jax.nn.relu(pool(conv(h, params["conv2_w"], params["conv2_b"])))
    h = h.reshape(h.shape[0], -1)
    h = jax.nn.relu(h @ params["fc1_w"] + params["fc1_b"])
    logits = h @ params["fc2_w"] + params["fc2_b"]
    return jax.nn.softmax(logits, axis=1)


if __name__ == "__main__":
    key = jax.random.PRNGKey(0)
    pkey, xkey = jax.random.split(key)
    params = init_params(pkey)
    # MNIST-style input implied by fc1 in_features=320 (= 20*4*4): 1x28x28.
    x = jax.random.normal(xkey, (2, 1, 28, 28), jnp.float32)

    folded = fold_params(params)          # one-time host-side weight repack
    out = jax.jit(net_forward)(x, folded)
    out = jax.block_until_ready(out)

    assert out.shape == (2, 10)
    # Softmax rows must sum to 1 (approx reciprocal -> ~1e-4 tolerance).
    assert jnp.allclose(jnp.sum(out, axis=1), 1.0, atol=5e-3)
    # Match the pure-f32 XLA reference (kernel uses bf16 matmul inputs).
    ref = reference_forward(x, params)
    err = float(jnp.max(jnp.abs(out - ref)))
    assert err < 2e-2, f"max abs err vs f32 reference: {err}"

    print("KERNEL_OK")
</pallas_src>

<mosaic_0001>
module attributes {stable_mosaic.version = 11 : i64} {
  func.func @_net_kernel(%arg0: i32, %arg1: memref<8x4x7x28xbf16, #tpu.memory_space<vmem>>, %arg2: memref<140x256xbf16, #tpu.memory_space<vmem>>, %arg3: memref<1x128xf32, #tpu.memory_space<vmem>>, %arg4: memref<640x256xbf16, #tpu.memory_space<vmem>>, %arg5: memref<1x128xf32, #tpu.memory_space<vmem>>, %arg6: memref<512x128xbf16, #tpu.memory_space<vmem>>, %arg7: memref<1x128xf32, #tpu.memory_space<vmem>>, %arg8: memref<128x128xbf16, #tpu.memory_space<vmem>>, %arg9: memref<1x128xf32, #tpu.memory_space<vmem>>, %arg10: memref<8x128xf32, #tpu.memory_space<vmem>>) attributes {dimension_semantics = [#tpu.dimension_semantics<parallel>], iteration_bounds = array<i64: 1>, scalar_prefetch = 0 : i64, scratch_operands = 0 : i64, tpu.core_type = #tpu.core_type<tc>, window_params = [{transform_indices = @transform_0, window_bounds = array<i64: 8, 4, 7, 28>}, {pipeline_mode = #tpu.pipeline_mode<synchronous>, transform_indices = @transform_1, window_bounds = array<i64: 140, 256>}, {pipeline_mode = #tpu.pipeline_mode<synchronous>, transform_indices = @transform_2, window_bounds = array<i64: 1, 128>}, {pipeline_mode = #tpu.pipeline_mode<synchronous>, transform_indices = @transform_3, window_bounds = array<i64: 640, 256>}, {pipeline_mode = #tpu.pipeline_mode<synchronous>, transform_indices = @transform_4, window_bounds = array<i64: 1, 128>}, {pipeline_mode = #tpu.pipeline_mode<synchronous>, transform_indices = @transform_5, window_bounds = array<i64: 512, 128>}, {pipeline_mode = #tpu.pipeline_mode<synchronous>, transform_indices = @transform_6, window_bounds = array<i64: 1, 128>}, {pipeline_mode = #tpu.pipeline_mode<synchronous>, transform_indices = @transform_7, window_bounds = array<i64: 128, 128>}, {pipeline_mode = #tpu.pipeline_mode<synchronous>, transform_indices = @transform_8, window_bounds = array<i64: 1, 128>}, {transform_indices = @transform_9, window_bounds = array<i64: 8, 128>}]} {
    %c0 = arith.constant 0 : index
    %c0_0 = arith.constant 0 : index
    %c0_1 = arith.constant 0 : index
    %c0_2 = arith.constant 0 : index
    %0 = vector.load %arg1[%c0, %c0_0, %c0_1, %c0_2] : memref<8x4x7x28xbf16, #tpu.memory_space<vmem>>, vector<8x4x7x28xbf16>
    %1 = vector.extract_strided_slice %0 {offsets = [0, 0, 0, 0], sizes = [8, 1, 6, 28], strides = [1, 1, 1, 1]} : vector<8x4x7x28xbf16> to vector<8x1x6x28xbf16>
    %2 = vector.shape_cast %1 : vector<8x1x6x28xbf16> to vector<8x6x28xbf16>
    %3 = vector.extract_strided_slice %0 {offsets = [0, 1, 0, 0], sizes = [8, 1, 6, 28], strides = [1, 1, 1, 1]} : vector<8x4x7x28xbf16> to vector<8x1x6x28xbf16>
    %4 = vector.shape_cast %3 : vector<8x1x6x28xbf16> to vector<8x6x28xbf16>
    %5 = vector.extract_strided_slice %0 {offsets = [0, 2, 0, 0], sizes = [8, 1, 6, 28], strides = [1, 1, 1, 1]} : vector<8x4x7x28xbf16> to vector<8x1x6x28xbf16>
    %6 = vector.shape_cast %5 : vector<8x1x6x28xbf16> to vector<8x6x28xbf16>
    %7 = vector.extract_strided_slice %0 {offsets = [0, 3, 0, 0], sizes = [8, 1, 6, 28], strides = [1, 1, 1, 1]} : vector<8x4x7x28xbf16> to vector<8x1x6x28xbf16>
    %8 = vector.shape_cast %7 : vector<8x1x6x28xbf16> to vector<8x6x28xbf16>
    %9 = vector.extract_strided_slice %0 {offsets = [0, 0, 1, 0], sizes = [8, 1, 6, 28], strides = [1, 1, 1, 1]} : vector<8x4x7x28xbf16> to vector<8x1x6x28xbf16>
    %10 = vector.shape_cast %9 : vector<8x1x6x28xbf16> to vector<8x6x28xbf16>
    %11 = tpu.concatenate %2, %4, %6, %8, %10 in 2 : vector<8x6x28xbf16>, vector<8x6x28xbf16>, vector<8x6x28xbf16>, vector<8x6x28xbf16>, vector<8x6x28xbf16> -> vector<8x6x140xbf16>
    %12 = vector.extract_strided_slice %0 {offsets = [0, 1, 0, 0], sizes = [8, 1, 6, 28], strides = [1, 1, 1, 1]} : vector<8x4x7x28xbf16> to vector<8x1x6x28xbf16>
    %13 = vector.shape_cast %12 : vector<8x1x6x28xbf16> to vector<8x6x28xbf16>
    %14 = vector.extract_strided_slice %0 {offsets = [0, 2, 0, 0], sizes = [8, 1, 6, 28], strides = [1, 1, 1, 1]} : vector<8x4x7x28xbf16> to vector<8x1x6x28xbf16>
    %15 = vector.shape_cast %14 : vector<8x1x6x28xbf16> to vector<8x6x28xbf16>
    %16 = vector.extract_strided_slice %0 {offsets = [0, 3, 0, 0], sizes = [8, 1, 6, 28], strides = [1, 1, 1, 1]} : vector<8x4x7x28xbf16> to vector<8x1x6x28xbf16>
    %17 = vector.shape_cast %16 : vector<8x1x6x28xbf16> to vector<8x6x28xbf16>
    %18 = vector.extract_strided_slice %0 {offsets = [0, 0, 1, 0], sizes = [8, 1, 6, 28], strides = [1, 1, 1, 1]} : vector<8x4x7x28xbf16> to vector<8x1x6x28xbf16>
    %19 = vector.shape_cast %18 : vector<8x1x6x28xbf16> to vector<8x6x28xbf16>
    %20 = vector.extract_strided_slice %0 {offsets = [0, 1, 1, 0], sizes = [8, 1, 6, 28], strides = [1, 1, 1, 1]} : vector<8x4x7x28xbf16> to vector<8x1x6x28xbf16>
    %21 = vector.shape_cast %20 : vector<8x1x6x28xbf16> to vector<8x6x28xbf16>
    %22 = tpu.concatenate %13, %15, %17, %19, %21 in 2 : vector<8x6x28xbf16>, vector<8x6x28xbf16>, vector<8x6x28xbf16>, vector<8x6x28xbf16>, vector<8x6x28xbf16> -> vector<8x6x140xbf16>
    %23 = vector.extract_strided_slice %0 {offsets = [0, 2, 0, 0], sizes = [8, 1, 6, 28], strides = [1, 1, 1, 1]} : vector<8x4x7x28xbf16> to vector<8x1x6x28xbf16>
    %24 = vector.shape_cast %23 : vector<8x1x6x28xbf16> to vector<8x6x28xbf16>
    %25 = vector.extract_strided_slice %0 {offsets = [0, 3, 0, 0], sizes = [8, 1, 6, 28], strides = [1, 1, 1, 1]} : vector<8x4x7x28xbf16> to vector<8x1x6x28xbf16>
    %26 = vector.shape_cast %25 : vector<8x1x6x28xbf16> to vector<8x6x28xbf16>
    %27 = vector.extract_strided_slice %0 {offsets = [0, 0, 1, 0], sizes = [8, 1, 6, 28], strides = [1, 1, 1, 1]} : vector<8x4x7x28xbf16> to vector<8x1x6x28xbf16>
    %28 = vector.shape_cast %27 : vector<8x1x6x28xbf16> to vector<8x6x28xbf16>
    %29 = vector.extract_strided_slice %0 {offsets = [0, 1, 1, 0], sizes = [8, 1, 6, 28], strides = [1, 1, 1, 1]} : vector<8x4x7x28xbf16> to vector<8x1x6x28xbf16>
    %30 = vector.shape_cast %29 : vector<8x1x6x28xbf16> to vector<8x6x28xbf16>
    %31 = vector.extract_strided_slice %0 {offsets = [0, 2, 1, 0], sizes = [8, 1, 6, 28], strides = [1, 1, 1, 1]} : vector<8x4x7x28xbf16> to vector<8x1x6x28xbf16>
    %32 = vector.shape_cast %31 : vector<8x1x6x28xbf16> to vector<8x6x28xbf16>
    %33 = tpu.concatenate %24, %26, %28, %30, %32 in 2 : vector<8x6x28xbf16>, vector<8x6x28xbf16>, vector<8x6x28xbf16>, vector<8x6x28xbf16>, vector<8x6x28xbf16> -> vector<8x6x140xbf16>
    %34 = vector.extract_strided_slice %0 {offsets = [0, 3, 0, 0], sizes = [8, 1, 6, 28], strides = [1, 1, 1, 1]} : vector<8x4x7x28xbf16> to vector<8x1x6x28xbf16>
    %35 = vector.shape_cast %34 : vector<8x1x6x28xbf16> to vector<8x6x28xbf16>
    %36 = vector.extract_strided_slice %0 {offsets = [0, 0, 1, 0], sizes = [8, 1, 6, 28], strides = [1, 1, 1, 1]} : vector<8x4x7x28xbf16> to vector<8x1x6x28xbf16>
    %37 = vector.shape_cast %36 : vector<8x1x6x28xbf16> to vector<8x6x28xbf16>
    %38 = vector.extract_strided_slice %0 {offsets = [0, 1, 1, 0], sizes = [8, 1, 6, 28], strides = [1, 1, 1, 1]} : vector<8x4x7x28xbf16> to vector<8x1x6x28xbf16>
    %39 = vector.shape_cast %38 : vector<8x1x6x28xbf16> to vector<8x6x28xbf16>
    %40 = vector.extract_strided_slice %0 {offsets = [0, 2, 1, 0], sizes = [8, 1, 6, 28], strides = [1, 1, 1, 1]} : vector<8x4x7x28xbf16> to vector<8x1x6x28xbf16>
    %41 = vector.shape_cast %40 : vector<8x1x6x28xbf16> to vector<8x6x28xbf16>
    %42 = vector.extract_strided_slice %0 {offsets = [0, 3, 1, 0], sizes = [8, 1, 6, 28], strides = [1, 1, 1, 1]} : vector<8x4x7x28xbf16> to vector<8x1x6x28xbf16>
    %43 = vector.shape_cast %42 : vector<8x1x6x28xbf16> to vector<8x6x28xbf16>
    %44 = tpu.concatenate %35, %37, %39, %41, %43 in 2 : vector<8x6x28xbf16>, vector<8x6x28xbf16>, vector<8x6x28xbf16>, vector<8x6x28xbf16>, vector<8x6x28xbf16> -> vector<8x6x140xbf16>
    %45 = tpu.concatenate %11, %22, %33, %44 in 1 : vector<8x6x140xbf16>, vector<8x6x140xbf16>, vector<8x6x140xbf16>, vector<8x6x140xbf16> -> vector<8x24x140xbf16>
    %46 = vector.shape_cast %45 : vector<8x24x140xbf16> to vector<192x140xbf16>
    %c0_3 = arith.constant 0 : index
    %c0_4 = arith.constant 0 : index
    %47 = vector.load %arg2[%c0_3, %c0_4] : memref<140x256xbf16, #tpu.memory_space<vmem>>, vector<140x256xbf16>
    %cst = arith.constant dense<0.000000e+00> : vector<192x256xf32>
    %48 = tpu.matmul %46, %47, %cst {dimension_numbers = #tpu.dot_dimension_numbers<[1], [0], [0], [1], [0, 0, 1, 1], [], []>} : vector<192x140xbf16>, vector<140x256xbf16>, vector<192x256xf32> -> vector<192x256xf32>
    %49 = vector.shape_cast %48 : vector<192x256xf32> to vector<8x24x256xf32>
    %50 = vector.extract_strided_slice %49 {offsets = [0, 0, 0], sizes = [8, 24, 128], strides = [1, 1, 1]} : vector<8x24x256xf32> to vector<8x24x128xf32>
    %51 = vector.extract_strided_slice %49 {offsets = [0, 0, 128], sizes = [8, 24, 128], strides = [1, 1, 1]} : vector<8x24x256xf32> to vector<8x24x128xf32>
    %52 = arith.maximumf %50, %51 : vector<8x24x128xf32>
    %53 = vector.extract_strided_slice %52 {offsets = [0, 0, 0], sizes = [8, 6, 128], strides = [1, 1, 1]} : vector<8x24x128xf32> to vector<8x6x128xf32>
    %54 = vector.extract_strided_slice %52 {offsets = [0, 6, 0], sizes = [8, 6, 128], strides = [1, 1, 1]} : vector<8x24x128xf32> to vector<8x6x128xf32>
    %55 = arith.maximumf %53, %54 : vector<8x6x128xf32>
    %56 = vector.extract_strided_slice %52 {offsets = [0, 12, 0], sizes = [8, 6, 128], strides = [1, 1, 1]} : vector<8x24x128xf32> to vector<8x6x128xf32>
    %57 = vector.extract_strided_slice %52 {offsets = [0, 18, 0], sizes = [8, 6, 128], strides = [1, 1, 1]} : vector<8x24x128xf32> to vector<8x6x128xf32>
    %58 = arith.maximumf %56, %57 : vector<8x6x128xf32>
    %59 = tpu.concatenate %55, %58 in 1 : vector<8x6x128xf32>, vector<8x6x128xf32> -> vector<8x12x128xf32>
    %c0_5 = arith.constant 0 : index
    %c0_6 = arith.constant 0 : index
    %60 = vector.load %arg3[%c0_5, %c0_6] : memref<1x128xf32, #tpu.memory_space<vmem>>, vector<1x128xf32>
    %61 = vector.shape_cast %60 : vector<1x128xf32> to vector<1x1x128xf32>
    %62 = vector.broadcast %61 : vector<1x1x128xf32> to vector<8x12x128xf32>
    %63 = arith.addf %59, %62 : vector<8x12x128xf32>
    %cst_7 = arith.constant 0.000000e+00 : f32
    %64 = vector.broadcast %cst_7 : f32 to vector<8x12x128xf32>
    %65 = arith.maximumf %63, %64 : vector<8x12x128xf32>
    %66 = arith.truncf %65 : vector<8x12x128xf32> to vector<8x12x128xbf16>
    %67 = vector.extract_strided_slice %66 {offsets = [0, 0, 0], sizes = [8, 4, 128], strides = [1, 1, 1]} : vector<8x12x128xbf16> to vector<8x4x128xbf16>
    %68 = vector.extract_strided_slice %66 {offsets = [0, 6, 0], sizes = [8, 4, 128], strides = [1, 1, 1]} : vector<8x12x128xbf16> to vector<8x4x128xbf16>
    %69 = vector.extract_strided_slice %66 {offsets = [0, 1, 0], sizes = [8, 4, 128], strides = [1, 1, 1]} : vector<8x12x128xbf16> to vector<8x4x128xbf16>
    %70 = vector.extract_strided_slice %66 {offsets = [0, 7, 0], sizes = [8, 4, 128], strides = [1, 1, 1]} : vector<8x12x128xbf16> to vector<8x4x128xbf16>
    %71 = vector.extract_strided_slice %66 {offsets = [0, 2, 0], sizes = [8, 4, 128], strides = [1, 1, 1]} : vector<8x12x128xbf16> to vector<8x4x128xbf16>
    %72 = tpu.concatenate %67, %68, %69, %70, %71 in 2 : vector<8x4x128xbf16>, vector<8x4x128xbf16>, vector<8x4x128xbf16>, vector<8x4x128xbf16>, vector<8x4x128xbf16> -> vector<8x4x640xbf16>
    %73 = vector.extract_strided_slice %66 {offsets = [0, 6, 0], sizes = [8, 4, 128], strides = [1, 1, 1]} : vector<8x12x128xbf16> to vector<8x4x128xbf16>
    %74 = vector.extract_strided_slice %66 {offsets = [0, 1, 0], sizes = [8, 4, 128], strides = [1, 1, 1]} : vector<8x12x128xbf16> to vector<8x4x128xbf16>
    %75 = vector.extract_strided_slice %66 {offsets = [0, 7, 0], sizes = [8, 4, 128], strides = [1, 1, 1]} : vector<8x12x128xbf16> to vector<8x4x128xbf16>
    %76 = vector.extract_strided_slice %66 {offsets = [0, 2, 0], sizes = [8, 4, 128], strides = [1, 1, 1]} : vector<8x12x128xbf16> to vector<8x4x128xbf16>
    %77 = vector.extract_strided_slice %66 {offsets = [0, 8, 0], sizes = [8, 4, 128], strides = [1, 1, 1]} : vector<8x12x128xbf16> to vector<8x4x128xbf16>
    %78 = tpu.concatenate %73, %74, %75, %76, %77 in 2 : vector<8x4x128xbf16>, vector<8x4x128xbf16>, vector<8x4x128xbf16>, vector<8x4x128xbf16>, vector<8x4x128xbf16> -> vector<8x4x640xbf16>
    %79 = tpu.concatenate %72, %78 in 1 : vector<8x4x640xbf16>, vector<8x4x640xbf16> -> vector<8x8x640xbf16>
    %80 = vector.shape_cast %79 : vector<8x8x640xbf16> to vector<64x640xbf16>
    %c0_8 = arith.constant 0 : index
    %c0_9 = arith.constant 0 : index
    %81 = vector.load %arg4[%c0_8, %c0_9] : memref<640x256xbf16, #tpu.memory_space<vmem>>, vector<640x256xbf16>
    %cst_10 = arith.constant dense<0.000000e+00> : vector<64x256xf32>
    %82 = tpu.matmul %80, %81, %cst_10 {dimension_numbers = #tpu.dot_dimension_numbers<[1], [0], [0], [1], [0, 0, 1, 1], [], []>} : vector<64x640xbf16>, vector<640x256xbf16>, vector<64x256xf32> -> vector<64x256xf32>
    %83 = vector.shape_cast %82 : vector<64x256xf32> to vector<8x8x256xf32>
    %84 = vector.extract_strided_slice %83 {offsets = [0, 0, 0], sizes = [8, 8, 128], strides = [1, 1, 1]} : vector<8x8x256xf32> to vector<8x8x128xf32>
    %85 = vector.extract_strided_slice %83 {offsets = [0, 0, 128], sizes = [8, 8, 128], strides = [1, 1, 1]} : vector<8x8x256xf32> to vector<8x8x128xf32>
    %86 = arith.maximumf %84, %85 : vector<8x8x128xf32>
    %87 = vector.extract_strided_slice %86 {offsets = [0, 0, 0], sizes = [8, 4, 128], strides = [1, 1, 1]} : vector<8x8x128xf32> to vector<8x4x128xf32>
    %88 = vector.extract_strided_slice %86 {offsets = [0, 4, 0], sizes = [8, 4, 128], strides = [1, 1, 1]} : vector<8x8x128xf32> to vector<8x4x128xf32>
    %89 = arith.maximumf %87, %88 : vector<8x4x128xf32>
    %c0_11 = arith.constant 0 : index
    %c0_12 = arith.constant 0 : index
    %90 = vector.load %arg5[%c0_11, %c0_12] : memref<1x128xf32, #tpu.memory_space<vmem>>, vector<1x128xf32>
    %91 = vector.shape_cast %90 : vector<1x128xf32> to vector<1x1x128xf32>
    %92 = vector.broadcast %91 : vector<1x1x128xf32> to vector<8x4x128xf32>
    %93 = arith.addf %89, %92 : vector<8x4x128xf32>
    %cst_13 = arith.constant 0.000000e+00 : f32
    %94 = vector.broadcast %cst_13 : f32 to vector<8x4x128xf32>
    %95 = arith.maximumf %93, %94 : vector<8x4x128xf32>
    %96 = arith.truncf %95 : vector<8x4x128xf32> to vector<8x4x128xbf16>
    %97 = vector.extract_strided_slice %96 {offsets = [0, 0, 0], sizes = [8, 1, 128], strides = [1, 1, 1]} : vector<8x4x128xbf16> to vector<8x1x128xbf16>
    %98 = vector.shape_cast %97 : vector<8x1x128xbf16> to vector<8x128xbf16>
    %99 = vector.extract_strided_slice %96 {offsets = [0, 1, 0], sizes = [8, 1, 128], strides = [1, 1, 1]} : vector<8x4x128xbf16> to vector<8x1x128xbf16>
    %100 = vector.shape_cast %99 : vector<8x1x128xbf16> to vector<8x128xbf16>
    %101 = vector.extract_strided_slice %96 {offsets = [0, 2, 0], sizes = [8, 1, 128], strides = [1, 1, 1]} : vector<8x4x128xbf16> to vector<8x1x128xbf16>
    %102 = vector.shape_cast %101 : vector<8x1x128xbf16> to vector<8x128xbf16>
    %103 = vector.extract_strided_slice %96 {offsets = [0, 3, 0], sizes = [8, 1, 128], strides = [1, 1, 1]} : vector<8x4x128xbf16> to vector<8x1x128xbf16>
    %104 = vector.shape_cast %103 : vector<8x1x128xbf16> to vector<8x128xbf16>
    %105 = tpu.concatenate %98, %100, %102, %104 in 1 : vector<8x128xbf16>, vector<8x128xbf16>, vector<8x128xbf16>, vector<8x128xbf16> -> vector<8x512xbf16>
    %c0_14 = arith.constant 0 : index
    %c0_15 = arith.constant 0 : index
    %106 = vector.load %arg6[%c0_14, %c0_15] : memref<512x128xbf16, #tpu.memory_space<vmem>>, vector<512x128xbf16>
    %cst_16 = arith.constant dense<0.000000e+00> : vector<8x128xf32>
    %107 = tpu.matmul %105, %106, %cst_16 {dimension_numbers = #tpu.dot_dimension_numbers<[1], [0], [0], [1], [0, 0, 1, 1], [], []>} : vector<8x512xbf16>, vector<512x128xbf16>, vector<8x128xf32> -> vector<8x128xf32>
    %c0_17 = arith.constant 0 : index
    %c0_18 = arith.constant 0 : index
    %108 = vector.load %arg7[%c0_17, %c0_18] : memref<1x128xf32, #tpu.memory_space<vmem>>, vector<1x128xf32>
    %109 = vector.broadcast %108 : vector<1x128xf32> to vector<8x128xf32>
    %110 = arith.addf %107, %109 : vector<8x128xf32>
    %cst_19 = arith.constant 0.000000e+00 : f32
    %111 = vector.broadcast %cst_19 : f32 to vector<8x128xf32>
    %112 = arith.maximumf %110, %111 : vector<8x128xf32>
    %113 = arith.truncf %112 : vector<8x128xf32> to vector<8x128xbf16>
    %c0_20 = arith.constant 0 : index
    %c0_21 = arith.constant 0 : index
    %114 = vector.load %arg8[%c0_20, %c0_21] : memref<128x128xbf16, #tpu.memory_space<vmem>>, vector<128x128xbf16>
    %cst_22 = arith.constant dense<0.000000e+00> : vector<8x128xf32>
    %115 = tpu.matmul %113, %114, %cst_22 {dimension_numbers = #tpu.dot_dimension_numbers<[1], [0], [0], [1], [0, 0, 1, 1], [], []>} : vector<8x128xbf16>, vector<128x128xbf16>, vector<8x128xf32> -> vector<8x128xf32>
    %c0_23 = arith.constant 0 : index
    %c0_24 = arith.constant 0 : index
    %116 = vector.load %arg9[%c0_23, %c0_24] : memref<1x128xf32, #tpu.memory_space<vmem>>, vector<1x128xf32>
    %117 = vector.broadcast %116 : vector<1x128xf32> to vector<8x128xf32>
    %118 = arith.addf %115, %117 : vector<8x128xf32>
    %cst_25 = arith.constant dense<0xFF800000> : vector<8xf32>
    %119 = vector.multi_reduction <maximumf>, %118, %cst_25 [1] : vector<8x128xf32> to vector<8xf32>
    %120 = vector.shape_cast %119 : vector<8xf32> to vector<8x1xf32>
    %121 = vector.broadcast %120 : vector<8x1xf32> to vector<8x128xf32>
    %122 = arith.subf %118, %121 : vector<8x128xf32>
    %123 = math.exp %122 : vector<8x128xf32>
    %cst_26 = arith.constant dense<0.000000e+00> : vector<8xf32>
    %124 = vector.multi_reduction <add>, %123, %cst_26 [1] : vector<8x128xf32> to vector<8xf32>
    %125 = vector.shape_cast %124 : vector<8xf32> to vector<8x1xf32>
    %126 = tpu.reciprocal %125 {approx = true} : vector<8x1xf32> -> vector<8x1xf32>
    %127 = vector.broadcast %126 : vector<8x1xf32> to vector<8x128xf32>
    %128 = arith.mulf %123, %127 : vector<8x128xf32>
    %c0_27 = arith.constant 0 : index
    %c0_28 = arith.constant 0 : index
    %129 = vector.load %arg10[%c0_27, %c0_28] : memref<8x128xf32, #tpu.memory_space<vmem>>, vector<8x128xf32>
    tpu.vector_store %arg10[%c0_27, %c0_28], %128 {strides = array<i32>} : memref<8x128xf32, #tpu.memory_space<vmem>>, vector<8x128xf32>,
    return
  }
  func.func @transform_0(%arg0: i32) -> (i32, i32, i32, i32) {
    %c0_i32 = arith.constant 0 : i32
    %c0_i32_0 = arith.constant 0 : i32
    %c0_i32_1 = arith.constant 0 : i32
    %c0_i32_2 = arith.constant 0 : i32
    return %arg0, %c0_i32, %c0_i32_0, %c0_i32_1 : i32, i32, i32, i32
  }
  func.func @transform_1(%arg0: i32) -> (i32, i32) {
    %c0_i32 = arith.constant 0 : i32
    %c0_i32_0 = arith.constant 0 : i32
    %c0_i32_1 = arith.constant 0 : i32
    return %c0_i32, %c0_i32_0 : i32, i32
  }
  func.func @transform_2(%arg0: i32) -> (i32, i32) {
    %c0_i32 = arith.constant 0 : i32
    %c0_i32_0 = arith.constant 0 : i32
    %c0_i32_1 = arith.constant 0 : i32
    return %c0_i32, %c0_i32_0 : i32, i32
  }
  func.func @transform_3(%arg0: i32) -> (i32, i32) {
    %c0_i32 = arith.constant 0 : i32
    %c0_i32_0 = arith.constant 0 : i32
    %c0_i32_1 = arith.constant 0 : i32
    return %c0_i32, %c0_i32_0 : i32, i32
  }
  func.func @transform_4(%arg0: i32) -> (i32, i32) {
    %c0_i32 = arith.constant 0 : i32
    %c0_i32_0 = arith.constant 0 : i32
    %c0_i32_1 = arith.constant 0 : i32
    return %c0_i32, %c0_i32_0 : i32, i32
  }
  func.func @transform_5(%arg0: i32) -> (i32, i32) {
    %c0_i32 = arith.constant 0 : i32
    %c0_i32_0 = arith.constant 0 : i32
    %c0_i32_1 = arith.constant 0 : i32
    return %c0_i32, %c0_i32_0 : i32, i32
  }
  func.func @transform_6(%arg0: i32) -> (i32, i32) {
    %c0_i32 = arith.constant 0 : i32
    %c0_i32_0 = arith.constant 0 : i32
    %c0_i32_1 = arith.constant 0 : i32
    return %c0_i32, %c0_i32_0 : i32, i32
  }
  func.func @transform_7(%arg0: i32) -> (i32, i32) {
    %c0_i32 = arith.constant 0 : i32
    %c0_i32_0 = arith.constant 0 : i32
    %c0_i32_1 = arith.constant 0 : i32
    return %c0_i32, %c0_i32_0 : i32, i32
  }
  func.func @transform_8(%arg0: i32) -> (i32, i32) {
    %c0_i32 = arith.constant 0 : i32
    %c0_i32_0 = arith.constant 0 : i32
    %c0_i32_1 = arith.constant 0 : i32
    return %c0_i32, %c0_i32_0 : i32, i32
  }
  func.func @transform_9(%arg0: i32) -> (i32, i32) {
    %c0_i32 = arith.constant 0 : i32
    %c0_i32_0 = arith.constant 0 : i32
    return %arg0, %c0_i32 : i32, i32
  }
}

</mosaic_0001>

<llo_original>
// kernel: net_forward.1
$region0: #{net_forward.1}
  #allocation0 [shape = 'u32[]', space=smem, size = 0x4, offset = 0x4, fixed_abs, tag = 'smem constant byte address 0x4 - core index']
  #allocation1 [shape = 'u32[144,128]{1,0:T(1,128)}', space=vmem, size = 0x12000, scoped, tag = 'internal scratch']
  %s0 = inlined_call_operand.vmem [shape: bf16[8,4,7,28], index: 0, kind: input, shape index: {}]
  %s1 = inlined_call_operand.vmem [shape: bf16[140,256], index: 1, kind: input, shape index: {}]
  %s2 = inlined_call_operand.vmem [shape: f32[1,128], index: 2, kind: input, shape index: {}]
  %s3 = inlined_call_operand.hbm [shape: bf16[640,256], index: 3, kind: input, shape index: {}]
  %s4 = inlined_call_operand.vmem [shape: f32[1,128], index: 4, kind: input, shape index: {}]
  %s5 = inlined_call_operand.vmem [shape: bf16[512,128], index: 5, kind: input, shape index: {}]
  %s6 = inlined_call_operand.vmem [shape: f32[1,128], index: 6, kind: input, shape index: {}]
  %s7 = inlined_call_operand.hbm [shape: bf16[128,128], index: 7, kind: input, shape index: {}]
  %s8 = inlined_call_operand.vmem [shape: f32[1,128], index: 8, kind: input, shape index: {}]
  %s9 = inlined_call_operand.vmem [shape: f32[8,128], index: 9, kind: output, shape index: {}]
  %s10 = sld [smem:[#allocation0]]
  $region54: #{net_forward.1} parent=0
    _
  %s12 = ssub.s32 1, %s10
  %s13 = scalar_select 0, %s12, %s10
  $region1: #{net_forward.1} parent=0
    #allocation2 [shape = 'u8[327680]{0}', space=vmem, size = 0x50000, scoped, tag = 'input window, operand 3, single buffered']
    #allocation3 [shape = 's32[1]{0}', space=sflag, size = 0x4, scoped, tag = 'scoped memory for net_forward.1']
    #allocation4 [shape = 'u8[32768]{0}', space=vmem, size = 0x8000, scoped, tag = 'input window, operand 7, single buffered']
    #allocation5 [shape = 's32[1]{0}', space=sflag, size = 0x4, scoped, tag = 'scoped memory for net_forward.1']
    %14 = vsyncpa [#allocation3], 0
    %15 = vsyncpa [#allocation5], 0
    // Predicated region
    $region2: #{net_forward.1} parent=1 // pred_check
      _
    $region3: #{net_forward.1} parent=1 // pred_check_branch
      %17 = sbr.rel (0) target = $region5
    $region4: #{net_forward.1} parent=1 // pred_region
      _
    $region5: #{net_forward.1} parent=1 // pred_fallthru
      _
    // Predicated region
    $region6: #{net_forward.1} parent=1 // pred_check
      _
    $region7: #{net_forward.1} parent=1 // pred_check_branch
      %19 = sbr.rel (0) target = $region9
    $region8: #{net_forward.1} parent=1 // pred_region
      _
    $region9: #{net_forward.1} parent=1 // pred_fallthru
      _
    // Predicated region
    $region10: #{net_forward.1} parent=1 // pred_check
      _
    $region11: #{net_forward.1} parent=1 // pred_check_branch
      %21 = sbr.rel (0) target = $region13
    $region12: #{net_forward.1} parent=1 // pred_region
      _
    $region13: #{net_forward.1} parent=1 // pred_fallthru
      _
    // Predicated region
    $region14: #{net_forward.1} parent=1 // pred_check
      _
    $region15: #{net_forward.1} parent=1 // pred_check_branch
      %23 = sbr.rel (0) target = $region17
    $region16: #{net_forward.1} parent=1 // pred_region
      %s25 = ssub.s32 10240, 10240
      %26 = vsyncadd [#allocation3], %s25
      %s27 = sshll.u32 [#allocation2], 4
      %s28 = int_to_ptr.vmem [resolvable:$true] %s27
      %33 = dma.hbm_to_vmem [thread:$0]  %s3, 10240, %s28, [#allocation3], 128, 128, 8
    $region17: #{net_forward.1} parent=1 // pred_fallthru
      _
    // Predicated region
    $region18: #{net_forward.1} parent=1 // pred_check
      _
    $region19: #{net_forward.1} parent=1 // pred_check_branch
      %35 = sbr.rel (0) target = $region21
    $region20: #{net_forward.1} parent=1 // pred_region
      _
    $region21: #{net_forward.1} parent=1 // pred_fallthru
      _
    // Predicated region
    $region22: #{net_forward.1} parent=1 // pred_check
      _
    $region23: #{net_forward.1} parent=1 // pred_check_branch
      %37 = sbr.rel (0) target = $region25
    $region24: #{net_forward.1} parent=1 // pred_region
      _
    $region25: #{net_forward.1} parent=1 // pred_fallthru
      _
    // Predicated region
    $region26: #{net_forward.1} parent=1 // pred_check
      _
    $region27: #{net_forward.1} parent=1 // pred_check_branch
      %39 = sbr.rel (0) target = $region29
    $region28: #{net_forward.1} parent=1 // pred_region
      _
    $region29: #{net_forward.1} parent=1 // pred_fallthru
      _
    // Predicated region
    $region30: #{net_forward.1} parent=1 // pred_check
      _
    $region31: #{net_forward.1} parent=1 // pred_check_branch
      %41 = sbr.rel (0) target = $region33
    $region32: #{net_forward.1} parent=1 // pred_region
      %s43 = ssub.s32 1024, 1024
      %44 = vsyncadd [#allocation5], %s43
      %s45 = sshll.u32 [#allocation4], 4
      %s46 = int_to_ptr.vmem [resolvable:$true] %s45
      %51 = dma.hbm_to_vmem [thread:$0]  %s7, 1024, %s46, [#allocation5], 64, 64, 4
    $region33: #{net_forward.1} parent=1 // pred_fallthru
      _
    // Predicated region
    $region34: #{net_forward.1} parent=1 // pred_check
      _
    $region35: #{net_forward.1} parent=1 // pred_check_branch
      %53 = sbr.rel (0) target = $region37
    $region36: #{net_forward.1} parent=1 // pred_region
      _
    $region37: #{net_forward.1} parent=1 // pred_fallthru
      _
    // Predicated region
    $region38: #{net_forward.1} parent=1 // pred_check
      _
    $region39: #{net_forward.1} parent=1 // pred_check_branch
      %55 = sbr.rel (0) target = $region41
    $region40: #{net_forward.1} parent=1 // pred_region
      %56 = dma.done [#allocation3], 10240
    $region41: #{net_forward.1} parent=1 // pred_fallthru
      _
    // Predicated region
    $region42: #{net_forward.1} parent=1 // pred_check
      _
    $region43: #{net_forward.1} parent=1 // pred_check_branch
      %58 = sbr.rel (0) target = $region45
    $region44: #{net_forward.1} parent=1 // pred_region
      %59 = dma.done [#allocation5], 1024
    $region45: #{net_forward.1} parent=1 // pred_fallthru
      _
    %v61 = vld [vmem:[%s0] sm:$0xf]
    %v62 = vld [vmem:[%s0 + $0x4] sm:$0xf]
    %v63 = vld [vmem:[%s0 + $0x8] sm:$0xf]
    %v64 = vld [vmem:[%s0 + $0xc] sm:$0xf]
    %v65 = vld [vmem:[%s0 + $0x10] sm:$0xf]
    %v66 = vld [vmem:[%s0 + $0x14] sm:$0xf]
    %v67 = vld [vmem:[%s0 + $0x18] sm:$0xf]
    %v68 = vld [vmem:[%s0 + $0x1c] sm:$0xf]
    %v69 = vld [vmem:[%s0 + $0x20] sm:$0xf]
    %v70 = vld [vmem:[%s0 + $0x24] sm:$0xf]
    %v71 = vld [vmem:[%s0 + $0x28] sm:$0xf]
    %v72 = vld [vmem:[%s0 + $0x2c] sm:$0xf]
    %v73 = vld [vmem:[%s0 + $0x30] sm:$0xf]
    %v74 = vld [vmem:[%s0 + $0x34] sm:$0xf]
    %v75 = vld [vmem:[%s0 + $0x38] sm:$0xf]
    %v76 = vld [vmem:[%s0 + $0x3c] sm:$0xf]
    %v77 = vld [vmem:[%s0 + $0x40] sm:$0xf]
    %v78 = vld [vmem:[%s0 + $0x44] sm:$0xf]
    %v79 = vld [vmem:[%s0 + $0x48] sm:$0xf]
    %v80 = vld [vmem:[%s0 + $0x4c] sm:$0xf]
    %v81 = vld [vmem:[%s0 + $0x50] sm:$0xf]
    %v82 = vld [vmem:[%s0 + $0x54] sm:$0xf]
    %v83 = vld [vmem:[%s0 + $0x58] sm:$0xf]
    %v84 = vld [vmem:[%s0 + $0x5c] sm:$0xf]
    %v85 = vld [vmem:[%s0 + $0x60] sm:$0xf]
    %v86 = vld [vmem:[%s0 + $0x64] sm:$0xf]
    %v87 = vld [vmem:[%s0 + $0x68] sm:$0xf]
    %v88 = vld [vmem:[%s0 + $0x6c] sm:$0xf]
    %v89 = vld [vmem:[%s0 + $0x70] sm:$0xf]
    %v90 = vld [vmem:[%s0 + $0x74] sm:$0xf]
    %v91 = vld [vmem:[%s0 + $0x78] sm:$0xf]
    %v92 = vld [vmem:[%s0 + $0x7c] sm:$0xf]
    %v101 = vunpack.c.l.b16 %v62
    %v102 = vunpack.c.l.b16 %v66
    %v103 = vunpack.c.l.b16 %v70
    %v104 = vunpack.c.l.b16 %v74
    %v105 = vunpack.c.l.b16 %v78
    %v106 = vunpack.c.l.b16 %v82
    %v107 = vunpack.c.l.b16 %v86
    %v108 = vunpack.c.l.b16 %v90
    %v109 = vpack.c.b16 %v101, %v101
    %v110 = vpack.c.b16 %v102, %v102
    %v111 = vpack.c.b16 %v103, %v103
    %v112 = vpack.c.b16 %v104, %v104
    %v113 = vpack.c.b16 %v105, %v105
    %v114 = vpack.c.b16 %v106, %v106
    %v115 = vpack.c.b16 %v107, %v107
    %v116 = vpack.c.b16 %v108, %v108
    %117 = vrot.lane.b32.xlu0 %v109, 28
    %v118 = vpop.permute.xlu0 %117
    %119 = vrot.lane.b32.xlu0 %v110, 28
    %v120 = vpop.permute.xlu0 %119
    %121 = vrot.lane.b32.xlu0 %v111, 28
    %v122 = vpop.permute.xlu0 %121
    %123 = vrot.lane.b32.xlu0 %v112, 28
    %v124 = vpop.permute.xlu0 %123
    %125 = vrot.lane.b32.xlu0 %v113, 28
    %v126 = vpop.permute.xlu0 %125
    %127 = vrot.lane.b32.xlu0 %v114, 28
    %v128 = vpop.permute.xlu0 %127
    %129 = vrot.lane.b32.xlu0 %v115, 28
    %v130 = vpop.permute.xlu0 %129
    %131 = vrot.lane.b32.xlu0 %v116, 28
    %v132 = vpop.permute.xlu0 %131
    %v141 = vunpack.c.l.b16 %v63
    %v142 = vunpack.c.l.b16 %v67
    %v143 = vunpack.c.l.b16 %v71
    %v144 = vunpack.c.l.b16 %v75
    %v145 = vunpack.c.l.b16 %v79
    %v146 = vunpack.c.l.b16 %v83
    %v147 = vunpack.c.l.b16 %v87
    %v148 = vunpack.c.l.b16 %v91
    %v149 = vpack.c.b16 %v141, %v141
    %v150 = vpack.c.b16 %v142, %v142
    %v151 = vpack.c.b16 %v143, %v143
    %v152 = vpack.c.b16 %v144, %v144
    %v153 = vpack.c.b16 %v145, %v145
    %v154 = vpack.c.b16 %v146, %v146
    %v155 = vpack.c.b16 %v147, %v147
    %v156 = vpack.c.b16 %v148, %v148
    %157 = vrot.lane.b32.xlu0 %v149, 56
    %v158 = vpop.permute.xlu0 %157
    %159 = vrot.lane.b32.xlu0 %v150, 56
    %v160 = vpop.permute.xlu0 %159
    %161 = vrot.lane.b32.xlu0 %v151, 56
    %v162 = vpop.permute.xlu0 %161
    %163 = vrot.lane.b32.xlu0 %v152, 56
    %v164 = vpop.permute.xlu0 %163
    %165 = vrot.lane.b32.xlu0 %v153, 56
    %v166 = vpop.permute.xlu0 %165
    %167 = vrot.lane.b32.xlu0 %v154, 56
    %v168 = vpop.permute.xlu0 %167
    %169 = vrot.lane.b32.xlu0 %v155, 56
    %v170 = vpop.permute.xlu0 %169
    %171 = vrot.lane.b32.xlu0 %v156, 56
    %v172 = vpop.permute.xlu0 %171
    %v181 = vunpack.c.l.b16 %v64
    %v182 = vunpack.c.l.b16 %v68
    %v183 = vunpack.c.l.b16 %v72
    %v184 = vunpack.c.l.b16 %v76
    %v185 = vunpack.c.l.b16 %v80
    %v186 = vunpack.c.l.b16 %v84
    %v187 = vunpack.c.l.b16 %v88
    %v188 = vunpack.c.l.b16 %v92
    %v189 = vpack.c.b16 %v181, %v181
    %v190 = vpack.c.b16 %v182, %v182
    %v191 = vpack.c.b16 %v183, %v183
    %v192 = vpack.c.b16 %v184, %v184
    %v193 = vpack.c.b16 %v185, %v185
    %v194 = vpack.c.b16 %v186, %v186
    %v195 = vpack.c.b16 %v187, %v187
    %v196 = vpack.c.b16 %v188, %v188
    %197 = vrot.lane.b32.xlu0 %v189, 84
    %v198 = vpop.permute.xlu0 %197
    %199 = vrot.lane.b32.xlu0 %v190, 84
    %v200 = vpop.permute.xlu0 %199
    %201 = vrot.lane.b32.xlu0 %v191, 84
    %v202 = vpop.permute.xlu0 %201
    %203 = vrot.lane.b32.xlu0 %v192, 84
    %v204 = vpop.permute.xlu0 %203
    %205 = vrot.lane.b32.xlu0 %v193, 84
    %v206 = vpop.permute.xlu0 %205
    %207 = vrot.lane.b32.xlu0 %v194, 84
    %v208 = vpop.permute.xlu0 %207
    %209 = vrot.lane.b32.xlu0 %v195, 84
    %v210 = vpop.permute.xlu0 %209
    %211 = vrot.lane.b32.xlu0 %v196, 84
    %v212 = vpop.permute.xlu0 %211
    %v221 = vunpack.c.l.b16 %v61
    %v222 = vunpack.c.l.b16 %v65
    %v223 = vunpack.c.l.b16 %v69
    %v224 = vunpack.c.l.b16 %v73
    %v225 = vunpack.c.l.b16 %v77
    %v226 = vunpack.c.l.b16 %v81
    %v227 = vunpack.c.l.b16 %v85
    %v228 = vunpack.c.l.b16 %v89
    %v229 = vpack.c.b16 %v221, %v221
    %v230 = vpack.c.b16 %v222, %v222
    %v231 = vpack.c.b16 %v223, %v223
    %v232 = vpack.c.b16 %v224, %v224
    %v233 = vpack.c.b16 %v225, %v225
    %v234 = vpack.c.b16 %v226, %v226
    %v235 = vpack.c.b16 %v227, %v227
    %v236 = vpack.c.b16 %v228, %v228
    %v238 = vshrl.u32 %v229, 16
    %v240 = vshll.u32 %v229, 16
    %v242 = vrot.slane %v240, 1
    %v243 = vor.u32 %v238, %v242
    %v245 = vshrl.u32 %v230, 16
    %v247 = vshll.u32 %v230, 16
    %v249 = vrot.slane %v247, 1
    %v250 = vor.u32 %v245, %v249
    %v252 = vshrl.u32 %v231, 16
    %v254 = vshll.u32 %v231, 16
    %v256 = vrot.slane %v254, 1
    %v257 = vor.u32 %v252, %v256
    %v259 = vshrl.u32 %v232, 16
    %v261 = vshll.u32 %v232, 16
    %v263 = vrot.slane %v261, 1
    %v264 = vor.u32 %v259, %v263
    %v266 = vshrl.u32 %v233, 16
    %v268 = vshll.u32 %v233, 16
    %v270 = vrot.slane %v268, 1
    %v271 = vor.u32 %v266, %v270
    %v273 = vshrl.u32 %v234, 16
    %v275 = vshll.u32 %v234, 16
    %v277 = vrot.slane %v275, 1
    %v278 = vor.u32 %v273, %v277
    %v280 = vshrl.u32 %v235, 16
    %v282 = vshll.u32 %v235, 16
    %v284 = vrot.slane %v282, 1
    %v285 = vor.u32 %v280, %v284
    %v287 = vshrl.u32 %v236, 16
    %v289 = vshll.u32 %v236, 16
    %v291 = vrot.slane %v289, 1
    %v292 = vor.u32 %v287, %v291
    %293 = vrot.lane.b32.xlu0 %v243, 112
    %v294 = vpop.permute.xlu0 %293
    %295 = vrot.lane.b32.xlu0 %v250, 112
    %v296 = vpop.permute.xlu0 %295
    %297 = vrot.lane.b32.xlu0 %v257, 112
    %v298 = vpop.permute.xlu0 %297
    %299 = vrot.lane.b32.xlu0 %v264, 112
    %v300 = vpop.permute.xlu0 %299
    %301 = vrot.lane.b32.xlu0 %v271, 112
    %v302 = vpop.permute.xlu0 %301
    %303 = vrot.lane.b32.xlu0 %v278, 112
    %v304 = vpop.permute.xlu0 %303
    %305 = vrot.lane.b32.xlu0 %v285, 112
    %v306 = vpop.permute.xlu0 %305
    %307 = vrot.lane.b32.xlu0 %v292, 112
    %v308 = vpop.permute.xlu0 %307
    %vm309 = vcmask 228352
    %v312 = vsel %vm309, %v61, %v118
    %v315 = vsel %vm309, %v65, %v120
    %v318 = vsel %vm309, %v69, %v122
    %v321 = vsel %vm309, %v73, %v124
    %v324 = vsel %vm309, %v77, %v126
    %v327 = vsel %vm309, %v81, %v128
    %v330 = vsel %vm309, %v85, %v130
    %v333 = vsel %vm309, %v89, %v132
    %vm334 = vcmask 457728
    %v336 = vsel %vm334, %v312, %v158
    %v338 = vsel %vm334, %v315, %v160
    %v340 = vsel %vm334, %v318, %v162
    %v342 = vsel %vm334, %v321, %v164
    %v344 = vsel %vm334, %v324, %v166
    %v346 = vsel %vm334, %v327, %v168
    %v348 = vsel %vm334, %v330, %v170
    %v350 = vsel %vm334, %v333, %v172
    %vm351 = vcmask 687104
    %v353 = vsel %vm351, %v336, %v198
    %v355 = vsel %vm351, %v338, %v200
    %v357 = vsel %vm351, %v340, %v202
    %v359 = vsel %vm351, %v342, %v204
    %v361 = vsel %vm351, %v344, %v206
    %v363 = vsel %vm351, %v346, %v208
    %v365 = vsel %vm351, %v348, %v210
    %v367 = vsel %vm351, %v350, %v212
    %vm368 = vcmask 916480
    %v370 = vsel %vm368, %v353, %v294
    %v372 = vsel %vm368, %v355, %v296
    %v374 = vsel %vm368, %v357, %v298
    %v376 = vsel %vm368, %v359, %v300
    %v378 = vsel %vm368, %v361, %v302
    %v380 = vsel %vm368, %v363, %v304
    %v382 = vsel %vm368, %v365, %v306
    %v384 = vsel %vm368, %v367, %v308
    %385 = vrot.lane.b32.xlu0 %v149, 28
    %v386 = vpop.permute.xlu0 %385
    %387 = vrot.lane.b32.xlu0 %v150, 28
    %v388 = vpop.permute.xlu0 %387
    %389 = vrot.lane.b32.xlu0 %v151, 28
    %v390 = vpop.permute.xlu0 %389
    %391 = vrot.lane.b32.xlu0 %v152, 28
    %v392 = vpop.permute.xlu0 %391
    %393 = vrot.lane.b32.xlu0 %v153, 28
    %v394 = vpop.permute.xlu0 %393
    %395 = vrot.lane.b32.xlu0 %v154, 28
    %v396 = vpop.permute.xlu0 %395
    %397 = vrot.lane.b32.xlu0 %v155, 28
    %v398 = vpop.permute.xlu0 %397
    %399 = vrot.lane.b32.xlu0 %v156, 28
    %v400 = vpop.permute.xlu0 %399
    %401 = vrot.lane.b32.xlu0 %v189, 56
    %v402 = vpop.permute.xlu0 %401
    %403 = vrot.lane.b32.xlu0 %v190, 56
    %v404 = vpop.permute.xlu0 %403
    %405 = vrot.lane.b32.xlu0 %v191, 56
    %v406 = vpop.permute.xlu0 %405
    %407 = vrot.lane.b32.xlu0 %v192, 56
    %v408 = vpop.permute.xlu0 %407
    %409 = vrot.lane.b32.xlu0 %v193, 56
    %v410 = vpop.permute.xlu0 %409
    %411 = vrot.lane.b32.xlu0 %v194, 56
    %v412 = vpop.permute.xlu0 %411
    %413 = vrot.lane.b32.xlu0 %v195, 56
    %v414 = vpop.permute.xlu0 %413
    %415 = vrot.lane.b32.xlu0 %v196, 56
    %v416 = vpop.permute.xlu0 %415
    %417 = vrot.lane.b32.xlu0 %v243, 84
    %v418 = vpop.permute.xlu0 %417
    %419 = vrot.lane.b32.xlu0 %v250, 84
    %v420 = vpop.permute.xlu0 %419
    %421 = vrot.lane.b32.xlu0 %v257, 84
    %v422 = vpop.permute.xlu0 %421
    %423 = vrot.lane.b32.xlu0 %v264, 84
    %v424 = vpop.permute.xlu0 %423
    %425 = vrot.lane.b32.xlu0 %v271, 84
    %v426 = vpop.permute.xlu0 %425
    %427 = vrot.lane.b32.xlu0 %v278, 84
    %v428 = vpop.permute.xlu0 %427
    %429 = vrot.lane.b32.xlu0 %v285, 84
    %v430 = vpop.permute.xlu0 %429
    %431 = vrot.lane.b32.xlu0 %v292, 84
    %v432 = vpop.permute.xlu0 %431
    %v434 = vshrl.u32 %v109, 16
    %v436 = vshll.u32 %v109, 16
    %v438 = vrot.slane %v436, 1
    %v439 = vor.u32 %v434, %v438
    %v441 = vshrl.u32 %v110, 16
    %v443 = vshll.u32 %v110, 16
    %v445 = vrot.slane %v443, 1
    %v446 = vor.u32 %v441, %v445
    %v448 = vshrl.u32 %v111, 16
    %v450 = vshll.u32 %v111, 16
    %v452 = vrot.slane %v450, 1
    %v453 = vor.u32 %v448, %v452
    %v455 = vshrl.u32 %v112, 16
    %v457 = vshll.u32 %v112, 16
    %v459 = vrot.slane %v457, 1
    %v460 = vor.u32 %v455, %v459
    %v462 = vshrl.u32 %v113, 16
    %v464 = vshll.u32 %v113, 16
    %v466 = vrot.slane %v464, 1
    %v467 = vor.u32 %v462, %v466
    %v469 = vshrl.u32 %v114, 16
    %v471 = vshll.u32 %v114, 16
    %v473 = vrot.slane %v471, 1
    %v474 = vor.u32 %v469, %v473
    %v476 = vshrl.u32 %v115, 16
    %v478 = vshll.u32 %v115, 16
    %v480 = vrot.slane %v478, 1
    %v481 = vor.u32 %v476, %v480
    %v483 = vshrl.u32 %v116, 16
    %v485 = vshll.u32 %v116, 16
    %v487 = vrot.slane %v485, 1
    %v488 = vor.u32 %v483, %v487
    %489 = vrot.lane.b32.xlu0 %v439, 112
    %v490 = vpop.permute.xlu0 %489
    %491 = vrot.lane.b32.xlu0 %v446, 112
    %v492 = vpop.permute.xlu0 %491
    %493 = vrot.lane.b32.xlu0 %v453, 112
    %v494 = vpop.permute.xlu0 %493
    %495 = vrot.lane.b32.xlu0 %v460, 112
    %v496 = vpop.permute.xlu0 %495
    %497 = vrot.lane.b32.xlu0 %v467, 112
    %v498 = vpop.permute.xlu0 %497
    %499 = vrot.lane.b32.xlu0 %v474, 112
    %v500 = vpop.permute.xlu0 %499
    %501 = vrot.lane.b32.xlu0 %v481, 112
    %v502 = vpop.permute.xlu0 %501
    %503 = vrot.lane.b32.xlu0 %v488, 112
    %v504 = vpop.permute.xlu0 %503
    %v507 = vsel %vm309, %v62, %v386
    %v510 = vsel %vm309, %v66, %v388
    %v513 = vsel %vm309, %v70, %v390
    %v516 = vsel %vm309, %v74, %v392
    %v519 = vsel %vm309, %v78, %v394
    %v522 = vsel %vm309, %v82, %v396
    %v525 = vsel %vm309, %v86, %v398
    %v528 = vsel %vm309, %v90, %v400
    %v530 = vsel %vm334, %v507, %v402
    %v532 = vsel %vm334, %v510, %v404
    %v534 = vsel %vm334, %v513, %v406
    %v536 = vsel %vm334, %v516, %v408
    %v538 = vsel %vm334, %v519, %v410
    %v540 = vsel %vm334, %v522, %v412
    %v542 = vsel %vm334, %v525, %v414
    %v544 = vsel %vm334, %v528, %v416
    %v546 = vsel %vm351, %v530, %v418
    %v548 = vsel %vm351, %v532, %v420
    %v550 = vsel %vm351, %v534, %v422
    %v552 = vsel %vm351, %v536, %v424
    %v554 = vsel %vm351, %v538, %v426
    %v556 = vsel %vm351, %v540, %v428
    %v558 = vsel %vm351, %v542, %v430
    %v560 = vsel %vm351, %v544, %v432
    %v562 = vsel %vm368, %v546, %v490
    %v564 = vsel %vm368, %v548, %v492
    %v566 = vsel %vm368, %v550, %v494
    %v568 = vsel %vm368, %v552, %v496
    %v570 = vsel %vm368, %v554, %v498
    %v572 = vsel %vm368, %v556, %v500
    %v574 = vsel %vm368, %v558, %v502
    %v576 = vsel %vm368, %v560, %v504
    %577 = vrot.lane.b32.xlu0 %v189, 28
    %v578 = vpop.permute.xlu0 %577
    %579 = vrot.lane.b32.xlu0 %v190, 28
    %v580 = vpop.permute.xlu0 %579
    %581 = vrot.lane.b32.xlu0 %v191, 28
    %v582 = vpop.permute.xlu0 %581
    %583 = vrot.lane.b32.xlu0 %v192, 28
    %v584 = vpop.permute.xlu0 %583
    %585 = vrot.lane.b32.xlu0 %v193, 28
    %v586 = vpop.permute.xlu0 %585
    %587 = vrot.lane.b32.xlu0 %v194, 28
    %v588 = vpop.permute.xlu0 %587
    %589 = vrot.lane.b32.xlu0 %v195, 28
    %v590 = vpop.permute.xlu0 %589
    %591 = vrot.lane.b32.xlu0 %v196, 28
    %v592 = vpop.permute.xlu0 %591
    %593 = vrot.lane.b32.xlu0 %v243, 56
    %v594 = vpop.permute.xlu0 %593
    %595 = vrot.lane.b32.xlu0 %v250, 56
    %v596 = vpop.permute.xlu0 %595
    %597 = vrot.lane.b32.xlu0 %v257, 56
    %v598 = vpop.permute.xlu0 %597
    %599 = vrot.lane.b32.xlu0 %v264, 56
    %v600 = vpop.permute.xlu0 %599
    %601 = vrot.lane.b32.xlu0 %v271, 56
    %v602 = vpop.permute.xlu0 %601
    %603 = vrot.lane.b32.xlu0 %v278, 56
    %v604 = vpop.permute.xlu0 %603
    %605 = vrot.lane.b32.xlu0 %v285, 56
    %v606 = vpop.permute.xlu0 %605
    %607 = vrot.lane.b32.xlu0 %v292, 56
    %v608 = vpop.permute.xlu0 %607
    %609 = vrot.lane.b32.xlu0 %v439, 84
    %v610 = vpop.permute.xlu0 %609
    %611 = vrot.lane.b32.xlu0 %v446, 84
    %v612 = vpop.permute.xlu0 %611
    %613 = vrot.lane.b32.xlu0 %v453, 84
    %v614 = vpop.permute.xlu0 %613
    %615 = vrot.lane.b32.xlu0 %v460, 84
    %v616 = vpop.permute.xlu0 %615
    %617 = vrot.lane.b32.xlu0 %v467, 84
    %v618 = vpop.permute.xlu0 %617
    %619 = vrot.lane.b32.xlu0 %v474, 84
    %v620 = vpop.permute.xlu0 %619
    %621 = vrot.lane.b32.xlu0 %v481, 84
    %v622 = vpop.permute.xlu0 %621
    %623 = vrot.lane.b32.xlu0 %v488, 84
    %v624 = vpop.permute.xlu0 %623
    %v626 = vshrl.u32 %v149, 16
    %v628 = vshll.u32 %v149, 16
    %v630 = vrot.slane %v628, 1
    %v631 = vor.u32 %v626, %v630
    %v633 = vshrl.u32 %v150, 16
    %v635 = vshll.u32 %v150, 16
    %v637 = vrot.slane %v635, 1
    %v638 = vor.u32 %v633, %v637
    %v640 = vshrl.u32 %v151, 16
    %v642 = vshll.u32 %v151, 16
    %v644 = vrot.slane %v642, 1
    %v645 = vor.u32 %v640, %v644
    %v647 = vshrl.u32 %v152, 16
    %v649 = vshll.u32 %v152, 16
    %v651 = vrot.slane %v649, 1
    %v652 = vor.u32 %v647, %v651
    %v654 = vshrl.u32 %v153, 16
    %v656 = vshll.u32 %v153, 16
    %v658 = vrot.slane %v656, 1
    %v659 = vor.u32 %v654, %v658
    %v661 = vshrl.u32 %v154, 16
    %v663 = vshll.u32 %v154, 16
    %v665 = vrot.slane %v663, 1
    %v666 = vor.u32 %v661, %v665
    %v668 = vshrl.u32 %v155, 16
    %v670 = vshll.u32 %v155, 16
    %v672 = vrot.slane %v670, 1
    %v673 = vor.u32 %v668, %v672
    %v675 = vshrl.u32 %v156, 16
    %v677 = vshll.u32 %v156, 16
    %v679 = vrot.slane %v677, 1
    %v680 = vor.u32 %v675, %v679
    %681 = vrot.lane.b32.xlu0 %v631, 112
    %v682 = vpop.permute.xlu0 %681
    %683 = vrot.lane.b32.xlu0 %v638, 112
    %v684 = vpop.permute.xlu0 %683
    %685 = vrot.lane.b32.xlu0 %v645, 112
    %v686 = vpop.permute.xlu0 %685
    %687 = vrot.lane.b32.xlu0 %v652, 112
    %v688 = vpop.permute.xlu0 %687
    %689 = vrot.lane.b32.xlu0 %v659, 112
    %v690 = vpop.permute.xlu0 %689
    %691 = vrot.lane.b32.xlu0 %v666, 112
    %v692 = vpop.permute.xlu0 %691
    %693 = vrot.lane.b32.xlu0 %v673, 112
    %v694 = vpop.permute.xlu0 %693
    %695 = vrot.lane.b32.xlu0 %v680, 112
    %v696 = vpop.permute.xlu0 %695
    %v699 = vsel %vm309, %v63, %v578
    %v702 = vsel %vm309, %v67, %v580
    %v705 = vsel %vm309, %v71, %v582
    %v708 = vsel %vm309, %v75, %v584
    %v711 = vsel %vm309, %v79, %v586
    %v714 = vsel %vm309, %v83, %v588
    %v717 = vsel %vm309, %v87, %v590
    %v720 = vsel %vm309, %v91, %v592
    %v722 = vsel %vm334, %v699, %v594
    %v724 = vsel %vm334, %v702, %v596
    %v726 = vsel %vm334, %v705, %v598
    %v728 = vsel %vm334, %v708, %v600
    %v730 = vsel %vm334, %v711, %v602
    %v732 = vsel %vm334, %v714, %v604
    %v734 = vsel %vm334, %v717, %v606
    %v736 = vsel %vm334, %v720, %v608
    %v738 = vsel %vm351, %v722, %v610
    %v740 = vsel %vm351, %v724, %v612
    %v742 = vsel %vm351, %v726, %v614
    %v744 = vsel %vm351, %v728, %v616
    %v746 = vsel %vm351, %v730, %v618
    %v748 = vsel %vm351, %v732, %v620
    %v750 = vsel %vm351, %v734, %v622
    %v752 = vsel %vm351, %v736, %v624
    %v754 = vsel %vm368, %v738, %v682
    %v756 = vsel %vm368, %v740, %v684
    %v758 = vsel %vm368, %v742, %v686
    %v760 = vsel %vm368, %v744, %v688
    %v762 = vsel %vm368, %v746, %v690
    %v764 = vsel %vm368, %v748, %v692
    %v766 = vsel %vm368, %v750, %v694
    %v768 = vsel %vm368, %v752, %v696
    %769 = vrot.lane.b32.xlu0 %v243, 28
    %v770 = vpop.permute.xlu0 %769
    %771 = vrot.lane.b32.xlu0 %v250, 28
    %v772 = vpop.permute.xlu0 %771
    %773 = vrot.lane.b32.xlu0 %v257, 28
    %v774 = vpop.permute.xlu0 %773
    %775 = vrot.lane.b32.xlu0 %v264, 28
    %v776 = vpop.permute.xlu0 %775
    %777 = vrot.lane.b32.xlu0 %v271, 28
    %v778 = vpop.permute.xlu0 %777
    %779 = vrot.lane.b32.xlu0 %v278, 28
    %v780 = vpop.permute.xlu0 %779
    %781 = vrot.lane.b32.xlu0 %v285, 28
    %v782 = vpop.permute.xlu0 %781
    %783 = vrot.lane.b32.xlu0 %v292, 28
    %v784 = vpop.permute.xlu0 %783
    %785 = vrot.lane.b32.xlu0 %v439, 56
    %v786 = vpop.permute.xlu0 %785
    %787 = vrot.lane.b32.xlu0 %v446, 56
    %v788 = vpop.permute.xlu0 %787
    %789 = vrot.lane.b32.xlu0 %v453, 56
    %v790 = vpop.permute.xlu0 %789
    %791 = vrot.lane.b32.xlu0 %v460, 56
    %v792 = vpop.permute.xlu0 %791
    %793 = vrot.lane.b32.xlu0 %v467, 56
    %v794 = vpop.permute.xlu0 %793
    %795 = vrot.lane.b32.xlu0 %v474, 56
    %v796 = vpop.permute.xlu0 %795
    %797 = vrot.lane.b32.xlu0 %v481, 56
    %v798 = vpop.permute.xlu0 %797
    %799 = vrot.lane.b32.xlu0 %v488, 56
    %v800 = vpop.permute.xlu0 %799
    %801 = vrot.lane.b32.xlu0 %v631, 84
    %v802 = vpop.permute.xlu0 %801
    %803 = vrot.lane.b32.xlu0 %v638, 84
    %v804 = vpop.permute.xlu0 %803
    %805 = vrot.lane.b32.xlu0 %v645, 84
    %v806 = vpop.permute.xlu0 %805
    %807 = vrot.lane.b32.xlu0 %v652, 84
    %v808 = vpop.permute.xlu0 %807
    %809 = vrot.lane.b32.xlu0 %v659, 84
    %v810 = vpop.permute.xlu0 %809
    %811 = vrot.lane.b32.xlu0 %v666, 84
    %v812 = vpop.permute.xlu0 %811
    %813 = vrot.lane.b32.xlu0 %v673, 84
    %v814 = vpop.permute.xlu0 %813
    %815 = vrot.lane.b32.xlu0 %v680, 84
    %v816 = vpop.permute.xlu0 %815
    %v818 = vshrl.u32 %v189, 16
    %v820 = vshll.u32 %v189, 16
    %v822 = vrot.slane %v820, 1
    %v823 = vor.u32 %v818, %v822
    %v825 = vshrl.u32 %v190, 16
    %v827 = vshll.u32 %v190, 16
    %v829 = vrot.slane %v827, 1
    %v830 = vor.u32 %v825, %v829
    %v832 = vshrl.u32 %v191, 16
    %v834 = vshll.u32 %v191, 16
    %v836 = vrot.slane %v834, 1
    %v837 = vor.u32 %v832, %v836
    %v839 = vshrl.u32 %v192, 16
    %v841 = vshll.u32 %v192, 16
    %v843 = vrot.slane %v841, 1
    %v844 = vor.u32 %v839, %v843
    %v846 = vshrl.u32 %v193, 16
    %v848 = vshll.u32 %v193, 16
    %v850 = vrot.slane %v848, 1
    %v851 = vor.u32 %v846, %v850
    %v853 = vshrl.u32 %v194, 16
    %v855 = vshll.u32 %v194, 16
    %v857 = vrot.slane %v855, 1
    %v858 = vor.u32 %v853, %v857
    %v860 = vshrl.u32 %v195, 16
    %v862 = vshll.u32 %v195, 16
    %v864 = vrot.slane %v862, 1
    %v865 = vor.u32 %v860, %v864
    %v867 = vshrl.u32 %v196, 16
    %v869 = vshll.u32 %v196, 16
    %v871 = vrot.slane %v869, 1
    %v872 = vor.u32 %v867, %v871
    %873 = vrot.lane.b32.xlu0 %v823, 112
    %v874 = vpop.permute.xlu0 %873
    %875 = vrot.lane.b32.xlu0 %v830, 112
    %v876 = vpop.permute.xlu0 %875
    %877 = vrot.lane.b32.xlu0 %v837, 112
    %v878 = vpop.permute.xlu0 %877
    %879 = vrot.lane.b32.xlu0 %v844, 112
    %v880 = vpop.permute.xlu0 %879
    %881 = vrot.lane.b32.xlu0 %v851, 112
    %v882 = vpop.permute.xlu0 %881
    %883 = vrot.lane.b32.xlu0 %v858, 112
    %v884 = vpop.permute.xlu0 %883
    %885 = vrot.lane.b32.xlu0 %v865, 112
    %v886 = vpop.permute.xlu0 %885
    %887 = vrot.lane.b32.xlu0 %v872, 112
    %v888 = vpop.permute.xlu0 %887
    %v891 = vsel %vm309, %v64, %v770
    %v894 = vsel %vm309, %v68, %v772
    %v897 = vsel %vm309, %v72, %v774
    %v900 = vsel %vm309, %v76, %v776
    %v903 = vsel %vm309, %v80, %v778
    %v906 = vsel %vm309, %v84, %v780
    %v909 = vsel %vm309, %v88, %v782
    %v912 = vsel %vm309, %v92, %v784
    %v914 = vsel %vm334, %v891, %v786
    %v916 = vsel %vm334, %v894, %v788
    %v918 = vsel %vm334, %v897, %v790
    %v920 = vsel %vm334, %v900, %v792
    %v922 = vsel %vm334, %v903, %v794
    %v924 = vsel %vm334, %v906, %v796
    %v926 = vsel %vm334, %v909, %v798
    %v928 = vsel %vm334, %v912, %v800
    %v930 = vsel %vm351, %v914, %v802
    %v932 = vsel %vm351, %v916, %v804
    %v934 = vsel %vm351, %v918, %v806
    %v936 = vsel %vm351, %v920, %v808
    %v938 = vsel %vm351, %v922, %v810
    %v940 = vsel %vm351, %v924, %v812
    %v942 = vsel %vm351, %v926, %v814
    %v944 = vsel %vm351, %v928, %v816
    %v946 = vsel %vm368, %v930, %v874
    %v948 = vsel %vm368, %v932, %v876
    %v950 = vsel %vm368, %v934, %v878
    %v952 = vsel %vm368, %v936, %v880
    %v954 = vsel %vm368, %v938, %v882
    %v956 = vsel %vm368, %v940, %v884
    %v958 = vsel %vm368, %v942, %v886
    %v960 = vsel %vm368, %v944, %v888
    %v969 = vrot.slane %v562, 5
    %v970 = vrot.slane %v490, 5
    %v971 = vrot.slane %v564, 5
    %v972 = vrot.slane %v492, 5
    %v973 = vrot.slane %v566, 5
    %v974 = vrot.slane %v494, 5
    %v975 = vrot.slane %v568, 5
    %v976 = vrot.slane %v496, 5
    %v977 = vrot.slane %v570, 5
    %v978 = vrot.slane %v498, 5
    %v979 = vrot.slane %v572, 5
    %v980 = vrot.slane %v500, 5
    %v981 = vrot.slane %v574, 5
    %v982 = vrot.slane %v502, 5
    %v983 = vrot.slane %v576, 5
    %v984 = vrot.slane %v504, 5
    %v993 = vrot.slane %v754, 2
    %v994 = vrot.slane %v682, 2
    %v995 = vrot.slane %v756, 2
    %v996 = vrot.slane %v684, 2
    %v997 = vrot.slane %v758, 2
    %v998 = vrot.slane %v686, 2
    %v999 = vrot.slane %v760, 2
    %v1000 = vrot.slane %v688, 2
    %v1001 = vrot.slane %v762, 2
    %v1002 = vrot.slane %v690, 2
    %v1003 = vrot.slane %v764, 2
    %v1004 = vrot.slane %v692, 2
    %v1005 = vrot.slane %v766, 2
    %v1006 = vrot.slane %v694, 2
    %v1007 = vrot.slane %v768, 2
    %v1008 = vrot.slane %v696, 2
    %v1017 = vrot.slane %v946, 7
    %v1018 = vrot.slane %v874, 7
    %v1019 = vrot.slane %v948, 7
    %v1020 = vrot.slane %v876, 7
    %v1021 = vrot.slane %v950, 7
    %v1022 = vrot.slane %v878, 7
    %v1023 = vrot.slane %v952, 7
    %v1024 = vrot.slane %v880, 7
    %v1025 = vrot.slane %v954, 7
    %v1026 = vrot.slane %v882, 7
    %v1027 = vrot.slane %v956, 7
    %v1028 = vrot.slane %v884, 7
    %v1029 = vrot.slane %v958, 7
    %v1030 = vrot.slane %v886, 7
    %v1031 = vrot.slane %v960, 7
    %v1032 = vrot.slane %v888, 7
    %vm1033 = vcmask 1042432
    %v1035 = vsel %vm1033, %v370, %v969
    %v1037 = vsel %vm1033, %v294, %v970
    %v1039 = vsel %vm1033, %v372, %v971
    %v1041 = vsel %vm1033, %v296, %v972
    %v1043 = vsel %vm1033, %v374, %v973
    %v1045 = vsel %vm1033, %v298, %v974
    %v1047 = vsel %vm1033, %v376, %v975
    %v1049 = vsel %vm1033, %v300, %v976
    %v1051 = vsel %vm1033, %v378, %v977
    %v1053 = vsel %vm1033, %v302, %v978
    %v1055 = vsel %vm1033, %v380, %v979
    %v1057 = vsel %vm1033, %v304, %v980
    %v1059 = vsel %vm1033, %v382, %v981
    %v1061 = vsel %vm1033, %v306, %v982
    %v1063 = vsel %vm1033, %v384, %v983
    %v1065 = vsel %vm1033, %v308, %v984
    %vm1066 = vcmask 1045504
    %v1068 = vsel %vm1066, %v1035, %v993
    %v1070 = vsel %vm1066, %v1037, %v994
    %v1072 = vsel %vm1066, %v1039, %v995
    %v1074 = vsel %vm1066, %v1041, %v996
    %v1076 = vsel %vm1066, %v1043, %v997
    %v1078 = vsel %vm1066, %v1045, %v998
    %v1080 = vsel %vm1066, %v1047, %v999
    %v1082 = vsel %vm1066, %v1049, %v1000
    %v1084 = vsel %vm1066, %v1051, %v1001
    %v1086 = vsel %vm1066, %v1053, %v1002
    %v1088 = vsel %vm1066, %v1055, %v1003
    %v1090 = vsel %vm1066, %v1057, %v1004
    %v1092 = vsel %vm1066, %v1059, %v1005
    %v1094 = vsel %vm1066, %v1061, %v1006
    %v1096 = vsel %vm1066, %v1063, %v1007
    %v1098 = vsel %vm1066, %v1065, %v1008
    %vm1099 = vcmask 1040384
    %v1101 = vsel %vm1099, %v993, %v1017
    %v1103 = vsel %vm1099, %v994, %v1018
    %v1105 = vsel %vm1099, %v995, %v1019
    %v1107 = vsel %vm1099, %v996, %v1020
    %v1109 = vsel %vm1099, %v997, %v1021
    %v1111 = vsel %vm1099, %v998, %v1022
    %v1113 = vsel %vm1099, %v999, %v1023
    %v1115 = vsel %vm1099, %v1000, %v1024
    %v1117 = vsel %vm1099, %v1001, %v1025
    %v1119 = vsel %vm1099, %v1002, %v1026
    %v1121 = vsel %vm1099, %v1003, %v1027
    %v1123 = vsel %vm1099, %v1004, %v1028
    %v1125 = vsel %vm1099, %v1005, %v1029
    %v1127 = vsel %vm1099, %v1006, %v1030
    %v1129 = vsel %vm1099, %v1007, %v1031
    %v1131 = vsel %vm1099, %v1008, %v1032
    %v1164 = vunpack.c.l.b16 %v1068
    %v1165 = vunpack.c.l.b16 %v1070
    %v1166 = vunpack.c.h.b16 %v1068
    %v1167 = vunpack.c.h.b16 %v1070
    %v1168 = vunpack.c.l.b16 %v1101
    %v1169 = vunpack.c.l.b16 %v1103
    %v1170 = vunpack.c.l.b16 %v1072
    %v1171 = vunpack.c.l.b16 %v1074
    %v1172 = vunpack.c.h.b16 %v1072
    %v1173 = vunpack.c.h.b16 %v1074
    %v1174 = vunpack.c.l.b16 %v1105
    %v1175 = vunpack.c.l.b16 %v1107
    %v1176 = vunpack.c.l.b16 %v1076
    %v1177 = vunpack.c.l.b16 %v1078
    %v1178 = vunpack.c.h.b16 %v1076
    %v1179 = vunpack.c.h.b16 %v1078
    %v1180 = vunpack.c.l.b16 %v1109
    %v1181 = vunpack.c.l.b16 %v1111
    %v1182 = vunpack.c.l.b16 %v1080
    %v1183 = vunpack.c.l.b16 %v1082
    %v1184 = vunpack.c.h.b16 %v1080
    %v1185 = vunpack.c.h.b16 %v1082
    %v1186 = vunpack.c.l.b16 %v1113
    %v1187 = vunpack.c.l.b16 %v1115
    %v1188 = vunpack.c.l.b16 %v1084
    %v1189 = vunpack.c.l.b16 %v1086
    %v1190 = vunpack.c.h.b16 %v1084
    %v1191 = vunpack.c.h.b16 %v1086
    %v1192 = vunpack.c.l.b16 %v1117
    %v1193 = vunpack.c.l.b16 %v1119
    %v1194 = vunpack.c.l.b16 %v1088
    %v1195 = vunpack.c.l.b16 %v1090
    %v1196 = vunpack.c.h.b16 %v1088
    %v1197 = vunpack.c.h.b16 %v1090
    %v1198 = vunpack.c.l.b16 %v1121
    %v1199 = vunpack.c.l.b16 %v1123
    %v1200 = vunpack.c.l.b16 %v1092
    %v1201 = vunpack.c.l.b16 %v1094
    %v1202 = vunpack.c.h.b16 %v1092
    %v1203 = vunpack.c.h.b16 %v1094
    %v1204 = vunpack.c.l.b16 %v1125
    %v1205 = vunpack.c.l.b16 %v1127
    %v1206 = vunpack.c.l.b16 %v1096
    %v1207 = vunpack.c.l.b16 %v1098
    %v1208 = vunpack.c.h.b16 %v1096
    %v1209 = vunpack.c.h.b16 %v1098
    %v1210 = vunpack.c.l.b16 %v1129
    %v1211 = vunpack.c.l.b16 %v1131
    %v1212 = vld [vmem:[%s1] sm:$0xff]
    %v1213 = vld [vmem:[%s1 + $0x8] sm:$0xff]
    %v1214 = vld [vmem:[%s1 + $0x10] sm:$0xff]
    %v1215 = vld [vmem:[%s1 + $0x18] sm:$0xff]
    %v1216 = vld [vmem:[%s1 + $0x20] sm:$0xff]
    %v1217 = vld [vmem:[%s1 + $0x28] sm:$0xff]
    %v1218 = vld [vmem:[%s1 + $0x30] sm:$0xff]
    %v1219 = vld [vmem:[%s1 + $0x38] sm:$0xff]
    %v1220 = vld [vmem:[%s1 + $0x40] sm:$0xff]
    %v1221 = vld [vmem:[%s1 + $0x48] sm:$0xff]
    %v1222 = vld [vmem:[%s1 + $0x50] sm:$0xff]
    %v1223 = vld [vmem:[%s1 + $0x58] sm:$0xff]
    %v1224 = vld [vmem:[%s1 + $0x60] sm:$0xff]
    %v1225 = vld [vmem:[%s1 + $0x68] sm:$0xff]
    %v1226 = vld [vmem:[%s1 + $0x70] sm:$0xff]
    %v1227 = vld [vmem:[%s1 + $0x78] sm:$0xff]
    %v1228 = vld [vmem:[%s1 + $0x80] sm:$0xff]
    %v1229 = vld [vmem:[%s1 + $0x88] sm:$0x33]
    %v1230 = vpack.c.b16 %v1166, %v1164
    %v1231 = vpack.c.b16 %v1167, %v1165
    %v1232 = vpack.c.b16 %v1170, %v1168
    %v1233 = vpack.c.b16 %v1171, %v1169
    %v1234 = vpack.c.b16 %v1174, %v1172
    %v1235 = vpack.c.b16 %v1175, %v1173
    %v1236 = vpack.c.b16 %v1178, %v1176
    %v1237 = vpack.c.b16 %v1179, %v1177
    %v1238 = vpack.c.b16 %v1182, %v1180
    %v1239 = vpack.c.b16 %v1183, %v1181
    %v1240 = vpack.c.b16 %v1186, %v1184
    %v1241 = vpack.c.b16 %v1187, %v1185
    %v1242 = vpack.c.b16 %v1190, %v1188
    %v1243 = vpack.c.b16 %v1191, %v1189
    %v1244 = vpack.c.b16 %v1194, %v1192
    %v1245 = vpack.c.b16 %v1195, %v1193
    %v1246 = vpack.c.b16 %v1198, %v1196
    %v1247 = vpack.c.b16 %v1199, %v1197
    %v1248 = vpack.c.b16 %v1202, %v1200
    %v1249 = vpack.c.b16 %v1203, %v1201
    %v1250 = vpack.c.b16 %v1206, %v1204
    %v1251 = vpack.c.b16 %v1207, %v1205
    %v1252 = vpack.c.b16 %v1210, %v1208
    %v1253 = vpack.c.b16 %v1211, %v1209
    %v1284 = vunpack.c.l.b16 %v1212
    %v1285 = vunpack.c.h.b16 %v1212
    %v1286 = vunpack.c.l.b16 %v1213
    %v1287 = vunpack.c.h.b16 %v1213
    %v1288 = vunpack.c.l.b16 %v1214
    %v1289 = vunpack.c.h.b16 %v1214
    %v1290 = vunpack.c.l.b16 %v1215
    %v1291 = vunpack.c.h.b16 %v1215
    %v1292 = vunpack.c.l.b16 %v1216
    %v1293 = vunpack.c.h.b16 %v1216
    %v1294 = vunpack.c.l.b16 %v1217
    %v1295 = vunpack.c.h.b16 %v1217
    %v1296 = vunpack.c.l.b16 %v1218
    %v1297 = vunpack.c.h.b16 %v1218
    %v1298 = vunpack.c.l.b16 %v1219
    %v1299 = vunpack.c.h.b16 %v1219
    %v1300 = vunpack.c.l.b16 %v1220
    %v1301 = vunpack.c.h.b16 %v1220
    %v1302 = vunpack.c.l.b16 %v1221
    %v1303 = vunpack.c.h.b16 %v1221
    %v1304 = vunpack.c.l.b16 %v1222
    %v1305 = vunpack.c.h.b16 %v1222
    %v1306 = vunpack.c.l.b16 %v1223
    %v1307 = vunpack.c.h.b16 %v1223
    %v1308 = vunpack.c.l.b16 %v1224
    %v1309 = vunpack.c.h.b16 %v1224
    %v1310 = vunpack.c.l.b16 %v1225
    %v1311 = vunpack.c.h.b16 %v1225
    %v1312 = vunpack.c.l.b16 %v1226
    %v1313 = vunpack.c.h.b16 %v1226
    %v1314 = vunpack.c.l.b16 %v1227
    %v1315 = vunpack.c.h.b16 %v1227
    %v1316 = vunpack.c.l.b16 %v1228
    %v1317 = vunpack.c.h.b16 %v1228
    %v1318 = vunpack.c.l.b16 %v1229
    %v1319 = vunpack.c.h.b16 %v1229
    %v1320 = vpack.c.b16 %v1286, %v1284
    %v1321 = vpack.c.b16 %v1287, %v1285
    %v1322 = vpack.c.b16 %v1290, %v1288
    %v1323 = vpack.c.b16 %v1291, %v1289
    %v1324 = vpack.c.b16 %v1294, %v1292
    %v1325 = vpack.c.b16 %v1295, %v1293
    %v1326 = vpack.c.b16 %v1298, %v1296
    %v1327 = vpack.c.b16 %v1299, %v1297
    %v1328 = vpack.c.b16 %v1302, %v1300
    %v1329 = vpack.c.b16 %v1303, %v1301
    %v1330 = vpack.c.b16 %v1306, %v1304
    %v1331 = vpack.c.b16 %v1307, %v1305
    %v1332 = vpack.c.b16 %v1310, %v1308
    %v1333 = vpack.c.b16 %v1311, %v1309
    %v1334 = vpack.c.b16 %v1314, %v1312
    %v1335 = vpack.c.b16 %v1315, %v1313
    %v1336 = vpack.c.b16 %v1318, %v1316
    %v1337 = vpack.c.b16 %v1319, %v1317
    %vm1354 = vcmask 97280
    %v1356 = vsel %vm1354, %v1231, 0
    %v1359 = vsel %vm1354, %v1233, 0
    %v1362 = vsel %vm1354, %v1235, 0
    %v1365 = vsel %vm1354, %v1237, 0
    %v1368 = vsel %vm1354, %v1239, 0
    %v1371 = vsel %vm1354, %v1241, 0
    %v1374 = vsel %vm1354, %v1243, 0
    %v1377 = vsel %vm1354, %v1245, 0
    %v1380 = vsel %vm1354, %v1247, 0
    %v1383 = vsel %vm1354, %v1249, 0
    %v1386 = vsel %vm1354, %v1251, 0
    %v1389 = vsel %vm1354, %v1253, 0
    %v1392 = vsel %vm1066, %v1336, 0
    %v1395 = vsel %vm1066, %v1337, 0
    %1397 = vmatprep.subr.bf16.mxu0 %v1321
    %1398 = vmatpush1.bf16.msra.mxu0 %v1320
    %1399 = vmatprep.subr.bf16.mxu0 %v1323
    %1400 = vmatpush1.bf16.msra.mxu0 %v1322
    %1401 = vmatprep.subr.bf16.mxu0 %v1325
    %1402 = vmatpush1.bf16.msra.mxu0 %v1324
    %1403 = vmatprep.subr.bf16.mxu0 %v1327
    %1404 = vmatpush1.bf16.msra.mxu0 %v1326
    %1405 = vmatprep.subr.bf16.mxu0 %v1329
    %1406 = vmatpush1.bf16.msra.mxu0 %v1328
    %1407 = vmatprep.subr.bf16.mxu0 %v1331
    %1408 = vmatpush1.bf16.msra.mxu0 %v1330
    %1409 = vmatprep.subr.bf16.mxu0 %v1333
    %1410 = vmatpush1.bf16.msra.mxu0 %v1332
    %1411 = vmatprep.subr.bf16.mxu0 %v1335
    %1412 = vmatpush1.bf16.msra.mxu0 %v1334
    %1413 = vmatprep.subr.bf16.mxu0 %v1395
    %1414 = vmatpush1.bf16.msra.mxu0 %v1392
    %1415 = vmatprep.subr.bf16.mxu0 0
    %1416 = vmatpush1.bf16.msra.mxu0 0
    %1417 = vmatprep.subr.bf16.mxu0 0
    %1418 = vmatpush1.bf16.msra.mxu0 0
    %1419 = vmatprep.subr.bf16.mxu0 0
    %1420 = vmatpush1.bf16.msra.mxu0 0
    %1421 = vmatprep.subr.bf16.mxu0 0
    %1422 = vmatpush1.bf16.msra.mxu0 0
    %1423 = vmatprep.subr.bf16.mxu0 0
    %1424 = vmatpush1.bf16.msra.mxu0 0
    %1425 = vmatprep.subr.bf16.mxu0 0
    %1426 = vmatpush1.bf16.msra.mxu0 0
    %1427 = vmatprep.subr.bf16.mxu0 0
    %1428 = vmatpush1.bf16.msra.mxu0 0
    %1429 = vmatprep.mubr.bf16.mxu0 %v1356
    %1430 = vmatmul.mubr.bf16.gmra.mrb[0].mxu0 %v1230
    %v1431 = vpop.f32.mrb[0].mxu0
    %v1432 = vadd.f32 0.0, %v1431
    %v1433 = vpop.f32.mrb[0].mxu0
    %v1434 = vadd.f32 0.0, %v1433
    %v1435 = vpop.f32.mrb[0].mxu0
    %v1436 = vadd.f32 0.0, %v1435
    %v1437 = vpop.f32.mrb[0].mxu0
    %v1438 = vadd.f32 0.0, %v1437
    %1439 = vmatprep.mubr.bf16.mxu0 %v1359
    %1440 = vmatmul.mubr.bf16.gmra.mrb[0].mxu0 %v1232
    %v1441 = vpop.f32.mrb[0].mxu0
    %v1442 = vadd.f32 0.0, %v1441
    %v1443 = vpop.f32.mrb[0].mxu0
    %v1444 = vadd.f32 0.0, %v1443
    %v1445 = vpop.f32.mrb[0].mxu0
    %v1446 = vadd.f32 0.0, %v1445
    %v1447 = vpop.f32.mrb[0].mxu0
    %v1448 = vadd.f32 0.0, %v1447
    %1449 = vmatprep.mubr.bf16.mxu0 %v1362
    %1450 = vmatmul.mubr.bf16.gmra.mrb[0].mxu0 %v1234
    %v1451 = vpop.f32.mrb[0].mxu0
    %v1452 = vadd.f32 0.0, %v1451
    %v1453 = vpop.f32.mrb[0].mxu0
    %v1454 = vadd.f32 0.0, %v1453
    %v1455 = vpop.f32.mrb[0].mxu0
    %v1456 = vadd.f32 0.0, %v1455
    %v1457 = vpop.f32.mrb[0].mxu0
    %v1458 = vadd.f32 0.0, %v1457
    %1459 = vmatprep.mubr.bf16.mxu0 %v1365
    %1460 = vmatmul.mubr.bf16.gmra.mrb[0].mxu0 %v1236
    %v1461 = vpop.f32.mrb[0].mxu0
    %v1462 = vadd.f32 0.0, %v1461
    %v1463 = vpop.f32.mrb[0].mxu0
    %v1464 = vadd.f32 0.0, %v1463
    %v1465 = vpop.f32.mrb[0].mxu0
    %v1466 = vadd.f32 0.0, %v1465
    %v1467 = vpop.f32.mrb[0].mxu0
    %v1468 = vadd.f32 0.0, %v1467
    %1469 = vmatprep.mubr.bf16.mxu0 %v1368
    %1470 = vmatmul.mubr.bf16.gmra.mrb[0].mxu0 %v1238
    %v1471 = vpop.f32.mrb[0].mxu0
    %v1472 = vadd.f32 0.0, %v1471
    %v1473 = vpop.f32.mrb[0].mxu0
    %v1474 = vadd.f32 0.0, %v1473
    %v1475 = vpop.f32.mrb[0].mxu0
    %v1476 = vadd.f32 0.0, %v1475
    %v1477 = vpop.f32.mrb[0].mxu0
    %v1478 = vadd.f32 0.0, %v1477
    %1479 = vmatprep.mubr.bf16.mxu0 %v1371
    %1480 = vmatmul.mubr.bf16.gmra.mrb[0].mxu0 %v1240
    %v1481 = vpop.f32.mrb[0].mxu0
    %v1482 = vadd.f32 0.0, %v1481
    %v1483 = vpop.f32.mrb[0].mxu0
    %v1484 = vadd.f32 0.0, %v1483
    %v1485 = vpop.f32.mrb[0].mxu0
    %v1486 = vadd.f32 0.0, %v1485
    %v1487 = vpop.f32.mrb[0].mxu0
    %v1488 = vadd.f32 0.0, %v1487
    %1489 = vmatprep.mubr.bf16.mxu0 %v1374
    %1490 = vmatmul.mubr.bf16.gmra.mrb[0].mxu0 %v1242
    %v1491 = vpop.f32.mrb[0].mxu0
    %v1492 = vadd.f32 0.0, %v1491
    %v1493 = vpop.f32.mrb[0].mxu0
    %v1494 = vadd.f32 0.0, %v1493
    %v1495 = vpop.f32.mrb[0].mxu0
    %v1496 = vadd.f32 0.0, %v1495
    %v1497 = vpop.f32.mrb[0].mxu0
    %v1498 = vadd.f32 0.0, %v1497
    %1499 = vmatprep.mubr.bf16.mxu0 %v1377
    %1500 = vmatmul.mubr.bf16.gmra.mrb[0].mxu0 %v1244
    %v1501 = vpop.f32.mrb[0].mxu0
    %v1502 = vadd.f32 0.0, %v1501
    %v1503 = vpop.f32.mrb[0].mxu0
    %v1504 = vadd.f32 0.0, %v1503
    %v1505 = vpop.f32.mrb[0].mxu0
    %v1506 = vadd.f32 0.0, %v1505
    %v1507 = vpop.f32.mrb[0].mxu0
    %v1508 = vadd.f32 0.0, %v1507
    %1509 = vmatprep.mubr.bf16.mxu0 %v1380
    %1510 = vmatmul.mubr.bf16.gmra.mrb[0].mxu0 %v1246
    %v1511 = vpop.f32.mrb[0].mxu0
    %v1512 = vadd.f32 0.0, %v1511
    %v1513 = vpop.f32.mrb[0].mxu0
    %v1514 = vadd.f32 0.0, %v1513
    %v1515 = vpop.f32.mrb[0].mxu0
    %v1516 = vadd.f32 0.0, %v1515
    %v1517 = vpop.f32.mrb[0].mxu0
    %v1518 = vadd.f32 0.0, %v1517
    %1519 = vmatprep.mubr.bf16.mxu0 %v1383
    %1520 = vmatmul.mubr.bf16.gmra.mrb[0].mxu0 %v1248
    %v1521 = vpop.f32.mrb[0].mxu0
    %v1522 = vadd.f32 0.0, %v1521
    %v1523 = vpop.f32.mrb[0].mxu0
    %v1524 = vadd.f32 0.0, %v1523
    %v1525 = vpop.f32.mrb[0].mxu0
    %v1526 = vadd.f32 0.0, %v1525
    %v1527 = vpop.f32.mrb[0].mxu0
    %v1528 = vadd.f32 0.0, %v1527
    %1529 = vmatprep.mubr.bf16.mxu0 %v1386
    %1530 = vmatmul.mubr.bf16.gmra.mrb[0].mxu0 %v1250
    %v1531 = vpop.f32.mrb[0].mxu0
    %v1532 = vadd.f32 0.0, %v1531
    %v1533 = vpop.f32.mrb[0].mxu0
    %v1534 = vadd.f32 0.0, %v1533
    %v1535 = vpop.f32.mrb[0].mxu0
    %v1536 = vadd.f32 0.0, %v1535
    %v1537 = vpop.f32.mrb[0].mxu0
    %v1538 = vadd.f32 0.0, %v1537
    %1539 = vmatprep.mubr.bf16.mxu0 %v1389
    %1540 = vmatmul.mubr.bf16.gmra.mrb[0].mxu0 %v1252
    %v1541 = vpop.f32.mrb[0].mxu0
    %v1542 = vadd.f32 0.0, %v1541
    %v1543 = vpop.f32.mrb[0].mxu0
    %v1544 = vadd.f32 0.0, %v1543
    %v1545 = vpop.f32.mrb[0].mxu0
    %v1546 = vadd.f32 0.0, %v1545
    %v1547 = vpop.f32.mrb[0].mxu0
    %v1548 = vadd.f32 0.0, %v1547
    %1549 = vdwg.mxu0
    %v1550 = vmax.f32 %v1432, %v1434
    %v1551 = vmax.f32 %v1436, %v1438
    %v1552 = vmax.f32 %v1442, %v1444
    %v1553 = vmax.f32 %v1446, %v1448
    %v1554 = vmax.f32 %v1452, %v1454
    %v1555 = vmax.f32 %v1456, %v1458
    %v1556 = vmax.f32 %v1462, %v1464
    %v1557 = vmax.f32 %v1466, %v1468
    %v1558 = vmax.f32 %v1472, %v1474
    %v1559 = vmax.f32 %v1476, %v1478
    %v1560 = vmax.f32 %v1482, %v1484
    %v1561 = vmax.f32 %v1486, %v1488
    %v1562 = vmax.f32 %v1492, %v1494
    %v1563 = vmax.f32 %v1496, %v1498
    %v1564 = vmax.f32 %v1502, %v1504
    %v1565 = vmax.f32 %v1506, %v1508
    %v1566 = vmax.f32 %v1512, %v1514
    %v1567 = vmax.f32 %v1516, %v1518
    %v1568 = vmax.f32 %v1522, %v1524
    %v1569 = vmax.f32 %v1526, %v1528
    %v1570 = vmax.f32 %v1532, %v1534
    %v1571 = vmax.f32 %v1536, %v1538
    %v1572 = vmax.f32 %v1542, %v1544
    %v1573 = vmax.f32 %v1546, %v1548
    %vm1590 = vcmask 1041408
    %v1591 = vrot.slane %v1550, 6
    %v1592 = vrot.slane %v1551, 6
    %v1593 = vsel %vm1590, %v1591, %v1592
    %v1594 = vrot.slane %v1553, 6
    %v1595 = vrot.slane %v1554, 6
    %v1596 = vsel %vm1590, %v1594, %v1595
    %v1597 = vrot.slane %v1556, 6
    %v1598 = vrot.slane %v1557, 6
    %v1599 = vsel %vm1590, %v1597, %v1598
    %v1600 = vrot.slane %v1559, 6
    %v1601 = vrot.slane %v1560, 6
    %v1602 = vsel %vm1590, %v1600, %v1601
    %v1603 = vrot.slane %v1562, 6
    %v1604 = vrot.slane %v1563, 6
    %v1605 = vsel %vm1590, %v1603, %v1604
    %v1606 = vrot.slane %v1565, 6
    %v1607 = vrot.slane %v1566, 6
    %v1608 = vsel %vm1590, %v1606, %v1607
    %v1609 = vrot.slane %v1568, 6
    %v1610 = vrot.slane %v1569, 6
    %v1611 = vsel %vm1590, %v1609, %v1610
    %v1612 = vrot.slane %v1571, 6
    %v1613 = vrot.slane %v1572, 6
    %v1614 = vsel %vm1590, %v1612, %v1613
    %v1623 = vmax.f32 %v1550, %v1593
    %v1624 = vmax.f32 %v1553, %v1596
    %v1625 = vmax.f32 %v1556, %v1599
    %v1626 = vmax.f32 %v1559, %v1602
    %v1627 = vmax.f32 %v1562, %v1605
    %v1628 = vmax.f32 %v1565, %v1608
    %v1629 = vmax.f32 %v1568, %v1611
    %v1630 = vmax.f32 %v1571, %v1614
    %v1639 = vrot.slane %v1552, 6
    %v1640 = vrot.slane %v1555, 6
    %v1641 = vrot.slane %v1558, 6
    %v1642 = vrot.slane %v1561, 6
    %v1643 = vrot.slane %v1564, 6
    %v1644 = vrot.slane %v1567, 6
    %v1645 = vrot.slane %v1570, 6
    %v1646 = vrot.slane %v1573, 6
    %v1655 = vmax.f32 %v1551, %v1639
    %v1656 = vmax.f32 %v1552, %v1639
    %v1657 = vmax.f32 %v1554, %v1640
    %v1658 = vmax.f32 %v1555, %v1640
    %v1659 = vmax.f32 %v1557, %v1641
    %v1660 = vmax.f32 %v1558, %v1641
    %v1661 = vmax.f32 %v1560, %v1642
    %v1662 = vmax.f32 %v1561, %v1642
    %v1663 = vmax.f32 %v1563, %v1643
    %v1664 = vmax.f32 %v1564, %v1643
    %v1665 = vmax.f32 %v1566, %v1644
    %v1666 = vmax.f32 %v1567, %v1644
    %v1667 = vmax.f32 %v1569, %v1645
    %v1668 = vmax.f32 %v1570, %v1645
    %v1669 = vmax.f32 %v1572, %v1646
    %v1670 = vmax.f32 %v1573, %v1646
    %v1687 = vrot.slane %v1655, 6
    %v1688 = vrot.slane %v1656, 6
    %v1689 = vsel %vm1590, %v1687, %v1688
    %v1690 = vrot.slane %v1657, 6
    %v1691 = vrot.slane %v1658, 6
    %v1692 = vsel %vm1590, %v1690, %v1691
    %v1693 = vrot.slane %v1659, 6
    %v1694 = vrot.slane %v1660, 6
    %v1695 = vsel %vm1590, %v1693, %v1694
    %v1696 = vrot.slane %v1661, 6
    %v1697 = vrot.slane %v1662, 6
    %v1698 = vsel %vm1590, %v1696, %v1697
    %v1699 = vrot.slane %v1663, 6
    %v1700 = vrot.slane %v1664, 6
    %v1701 = vsel %vm1590, %v1699, %v1700
    %v1702 = vrot.slane %v1665, 6
    %v1703 = vrot.slane %v1666, 6
    %v1704 = vsel %vm1590, %v1702, %v1703
    %v1705 = vrot.slane %v1667, 6
    %v1706 = vrot.slane %v1668, 6
    %v1707 = vsel %vm1590, %v1705, %v1706
    %v1708 = vrot.slane %v1669, 6
    %v1709 = vrot.slane %v1670, 6
    %v1710 = vsel %vm1590, %v1708, %v1709
    %v1727 = vsel %vm1066, %v1623, %v1687
    %v1728 = vsel %vm1066, %v1624, %v1690
    %v1729 = vsel %vm1066, %v1625, %v1693
    %v1730 = vsel %vm1066, %v1626, %v1696
    %v1731 = vsel %vm1066, %v1627, %v1699
    %v1732 = vsel %vm1066, %v1628, %v1702
    %v1733 = vsel %vm1066, %v1629, %v1705
    %v1734 = vsel %vm1066, %v1630, %v1708
    %v1735 = vld [vmem:[%s2] sm:$0x1]
    %v1737 = vlaneseq
    %v1738 = vshrl.u32 %v1737, 7
    %v1739 = vsub.s32 0, %v1738
    %v1740 = vrot.slane %v1735, %v1739
    %v1742 = vadd.f32 %v1727, %v1740
    %v1743 = vadd.f32 %v1689, %v1740
    %v1744 = vadd.f32 %v1728, %v1740
    %v1745 = vadd.f32 %v1692, %v1740
    %v1746 = vadd.f32 %v1729, %v1740
    %v1747 = vadd.f32 %v1695, %v1740
    %v1748 = vadd.f32 %v1730, %v1740
    %v1749 = vadd.f32 %v1698, %v1740
    %v1750 = vadd.f32 %v1731, %v1740
    %v1751 = vadd.f32 %v1701, %v1740
    %v1752 = vadd.f32 %v1732, %v1740
    %v1753 = vadd.f32 %v1704, %v1740
    %v1754 = vadd.f32 %v1733, %v1740
    %v1755 = vadd.f32 %v1707, %v1740
    %v1756 = vadd.f32 %v1734, %v1740
    %v1757 = vadd.f32 %v1710, %v1740
    %v1758 = vmax.f32 %v1742, 0.0
    %v1759 = vmax.f32 %v1743, 0.0
    %v1760 = vmax.f32 %v1744, 0.0
    %v1761 = vmax.f32 %v1745, 0.0
    %v1762 = vmax.f32 %v1746, 0.0
    %v1763 = vmax.f32 %v1747, 0.0
    %v1764 = vmax.f32 %v1748, 0.0
    %v1765 = vmax.f32 %v1749, 0.0
    %v1766 = vmax.f32 %v1750, 0.0
    %v1767 = vmax.f32 %v1751, 0.0
    %v1768 = vmax.f32 %v1752, 0.0
    %v1769 = vmax.f32 %v1753, 0.0
    %v1770 = vmax.f32 %v1754, 0.0
    %v1771 = vmax.f32 %v1755, 0.0
    %v1772 = vmax.f32 %v1756, 0.0
    %v1773 = vmax.f32 %v1757, 0.0
    %v1774 = vpack.c.bf16 %v1759, %v1758
    %v1775 = vpack.c.bf16 %v1761, %v1760
    %v1776 = vpack.c.bf16 %v1763, %v1762
    %v1777 = vpack.c.bf16 %v1765, %v1764
    %v1778 = vpack.c.bf16 %v1767, %v1766
    %v1779 = vpack.c.bf16 %v1769, %v1768
    %v1780 = vpack.c.bf16 %v1771, %v1770
    %v1781 = vpack.c.bf16 %v1773, %v1772
    %v1790 = vrot.slane %v1774, 3
    %v1791 = vrot.slane %v1775, 3
    %v1792 = vrot.slane %v1776, 3
    %v1793 = vrot.slane %v1777, 3
    %v1794 = vrot.slane %v1778, 3
    %v1795 = vrot.slane %v1779, 3
    %v1796 = vrot.slane %v1780, 3
    %v1797 = vrot.slane %v1781, 3
    %v1799 = vshrl.u32 %v1774, 16
    %v1801 = vshll.u32 %v1774, 16
    %v1803 = vrot.slane %v1801, 1
    %v1804 = vor.u32 %v1799, %v1803
    %v1806 = vshrl.u32 %v1775, 16
    %v1808 = vshll.u32 %v1775, 16
    %v1810 = vrot.slane %v1808, 1
    %v1811 = vor.u32 %v1806, %v1810
    %v1813 = vshrl.u32 %v1776, 16
    %v1815 = vshll.u32 %v1776, 16
    %v1817 = vrot.slane %v1815, 1
    %v1818 = vor.u32 %v1813, %v1817
    %v1820 = vshrl.u32 %v1777, 16
    %v1822 = vshll.u32 %v1777, 16
    %v1824 = vrot.slane %v1822, 1
    %v1825 = vor.u32 %v1820, %v1824
    %v1827 = vshrl.u32 %v1778, 16
    %v1829 = vshll.u32 %v1778, 16
    %v1831 = vrot.slane %v1829, 1
    %v1832 = vor.u32 %v1827, %v1831
    %v1834 = vshrl.u32 %v1779, 16
    %v1836 = vshll.u32 %v1779, 16
    %v1838 = vrot.slane %v1836, 1
    %v1839 = vor.u32 %v1834, %v1838
    %v1841 = vshrl.u32 %v1780, 16
    %v1843 = vshll.u32 %v1780, 16
    %v1845 = vrot.slane %v1843, 1
    %v1846 = vor.u32 %v1841, %v1845
    %v1848 = vshrl.u32 %v1781, 16
    %v1850 = vshll.u32 %v1781, 16
    %v1852 = vrot.slane %v1850, 1
    %v1853 = vor.u32 %v1848, %v1852
    %v1854 = vrot.slane %v1799, 3
    %v1855 = vrot.slane %v1801, 4
    %v1856 = vor.u32 %v1854, %v1855
    %v1857 = vrot.slane %v1806, 3
    %v1858 = vrot.slane %v1808, 4
    %v1859 = vor.u32 %v1857, %v1858
    %v1860 = vrot.slane %v1813, 3
    %v1861 = vrot.slane %v1815, 4
    %v1862 = vor.u32 %v1860, %v1861
    %v1863 = vrot.slane %v1820, 3
    %v1864 = vrot.slane %v1822, 4
    %v1865 = vor.u32 %v1863, %v1864
    %v1866 = vrot.slane %v1827, 3
    %v1867 = vrot.slane %v1829, 4
    %v1868 = vor.u32 %v1866, %v1867
    %v1869 = vrot.slane %v1834, 3
    %v1870 = vrot.slane %v1836, 4
    %v1871 = vor.u32 %v1869, %v1870
    %v1872 = vrot.slane %v1841, 3
    %v1873 = vrot.slane %v1843, 4
    %v1874 = vor.u32 %v1872, %v1873
    %v1875 = vrot.slane %v1848, 3
    %v1876 = vrot.slane %v1850, 4
    %v1877 = vor.u32 %v1875, %v1876
    %v1878 = vrot.slane %v1774, 1
    %v1879 = vrot.slane %v1775, 1
    %v1880 = vrot.slane %v1776, 1
    %v1881 = vrot.slane %v1777, 1
    %v1882 = vrot.slane %v1778, 1
    %v1883 = vrot.slane %v1779, 1
    %v1884 = vrot.slane %v1780, 1
    %v1885 = vrot.slane %v1781, 1
    %v1886 = vrot.slane %v1799, 5
    %v1887 = vrot.slane %v1801, 6
    %v1888 = vor.u32 %v1886, %v1887
    %v1889 = vrot.slane %v1806, 5
    %v1890 = vrot.slane %v1808, 6
    %v1891 = vor.u32 %v1889, %v1890
    %v1892 = vrot.slane %v1813, 5
    %v1893 = vrot.slane %v1815, 6
    %v1894 = vor.u32 %v1892, %v1893
    %v1895 = vrot.slane %v1820, 5
    %v1896 = vrot.slane %v1822, 6
    %v1897 = vor.u32 %v1895, %v1896
    %v1898 = vrot.slane %v1827, 5
    %v1899 = vrot.slane %v1829, 6
    %v1900 = vor.u32 %v1898, %v1899
    %v1901 = vrot.slane %v1834, 5
    %v1902 = vrot.slane %v1836, 6
    %v1903 = vor.u32 %v1901, %v1902
    %v1904 = vrot.slane %v1841, 5
    %v1905 = vrot.slane %v1843, 6
    %v1906 = vor.u32 %v1904, %v1905
    %v1907 = vrot.slane %v1848, 5
    %v1908 = vrot.slane %v1850, 6
    %v1909 = vor.u32 %v1907, %v1908
    %v1910 = vrot.slane %v1774, 6
    %v1911 = vrot.slane %v1775, 6
    %v1912 = vrot.slane %v1776, 6
    %v1913 = vrot.slane %v1777, 6
    %v1914 = vrot.slane %v1778, 6
    %v1915 = vrot.slane %v1779, 6
    %v1916 = vrot.slane %v1780, 6
    %v1917 = vrot.slane %v1781, 6
    %v1918 = vrot.slane %v1888, 1
    %v1919 = vrot.slane %v1804, 1
    %v1920 = vrot.slane %v1910, 1
    %v1921 = vrot.slane %v1878, 1
    %v1922 = vrot.slane %v1891, 1
    %v1923 = vrot.slane %v1811, 1
    %v1924 = vrot.slane %v1911, 1
    %v1925 = vrot.slane %v1879, 1
    %v1926 = vrot.slane %v1894, 1
    %v1927 = vrot.slane %v1818, 1
    %v1928 = vrot.slane %v1912, 1
    %v1929 = vrot.slane %v1880, 1
    %v1930 = vrot.slane %v1897, 1
    %v1931 = vrot.slane %v1825, 1
    %v1932 = vrot.slane %v1913, 1
    %v1933 = vrot.slane %v1881, 1
    %v1934 = vrot.slane %v1900, 1
    %v1935 = vrot.slane %v1832, 1
    %v1936 = vrot.slane %v1914, 1
    %v1937 = vrot.slane %v1882, 1
    %v1938 = vrot.slane %v1903, 1
    %v1939 = vrot.slane %v1839, 1
    %v1940 = vrot.slane %v1915, 1
    %v1941 = vrot.slane %v1883, 1
    %v1942 = vrot.slane %v1906, 1
    %v1943 = vrot.slane %v1846, 1
    %v1944 = vrot.slane %v1916, 1
    %v1945 = vrot.slane %v1884, 1
    %v1946 = vrot.slane %v1909, 1
    %v1947 = vrot.slane %v1853, 1
    %v1948 = vrot.slane %v1917, 1
    %v1949 = vrot.slane %v1885, 1
    %v1951 = vsel %vm1590, %v1774, %v1878
    %v1954 = vsel %vm1590, %v1790, %v1918
    %v1957 = vsel %vm1590, %v1804, %v1919
    %v1960 = vsel %vm1590, %v1856, %v1920
    %v1962 = vsel %vm1590, %v1878, %v1921
    %v1964 = vsel %vm1590, %v1775, %v1879
    %v1967 = vsel %vm1590, %v1791, %v1922
    %v1970 = vsel %vm1590, %v1811, %v1923
    %v1973 = vsel %vm1590, %v1859, %v1924
    %v1975 = vsel %vm1590, %v1879, %v1925
    %v1977 = vsel %vm1590, %v1776, %v1880
    %v1980 = vsel %vm1590, %v1792, %v1926
    %v1983 = vsel %vm1590, %v1818, %v1927
    %v1986 = vsel %vm1590, %v1862, %v1928
    %v1988 = vsel %vm1590, %v1880, %v1929
    %v1990 = vsel %vm1590, %v1777, %v1881
    %v1993 = vsel %vm1590, %v1793, %v1930
    %v1996 = vsel %vm1590, %v1825, %v1931
    %v1999 = vsel %vm1590, %v1865, %v1932
    %v2001 = vsel %vm1590, %v1881, %v1933
    %v2003 = vsel %vm1590, %v1778, %v1882
    %v2006 = vsel %vm1590, %v1794, %v1934
    %v2009 = vsel %vm1590, %v1832, %v1935
    %v2012 = vsel %vm1590, %v1868, %v1936
    %v2014 = vsel %vm1590, %v1882, %v1937
    %v2016 = vsel %vm1590, %v1779, %v1883
    %v2019 = vsel %vm1590, %v1795, %v1938
    %v2022 = vsel %vm1590, %v1839, %v1939
    %v2025 = vsel %vm1590, %v1871, %v1940
    %v2027 = vsel %vm1590, %v1883, %v1941
    %v2029 = vsel %vm1590, %v1780, %v1884
    %v2032 = vsel %vm1590, %v1796, %v1942
    %v2035 = vsel %vm1590, %v1846, %v1943
    %v2038 = vsel %vm1590, %v1874, %v1944
    %v2040 = vsel %vm1590, %v1884, %v1945
    %v2042 = vsel %vm1590, %v1781, %v1885
    %v2045 = vsel %vm1590, %v1797, %v1946
    %v2048 = vsel %vm1590, %v1853, %v1947
    %v2051 = vsel %vm1590, %v1877, %v1948
    %v2053 = vsel %vm1590, %v1885, %v1949
    %v2094 = vunpack.c.l.b16 %v1951
    %v2095 = vunpack.c.l.b16 %v1954
    %v2096 = vunpack.c.l.b16 %v1957
    %v2097 = vunpack.c.l.b16 %v1960
    %v2098 = vunpack.c.l.b16 %v1962
    %v2099 = vunpack.c.l.b16 %v1964
    %v2100 = vunpack.c.l.b16 %v1967
    %v2101 = vunpack.c.l.b16 %v1970
    %v2102 = vunpack.c.l.b16 %v1973
    %v2103 = vunpack.c.l.b16 %v1975
    %v2104 = vunpack.c.l.b16 %v1977
    %v2105 = vunpack.c.l.b16 %v1980
    %v2106 = vunpack.c.l.b16 %v1983
    %v2107 = vunpack.c.l.b16 %v1986
    %v2108 = vunpack.c.l.b16 %v1988
    %v2109 = vunpack.c.l.b16 %v1990
    %v2110 = vunpack.c.l.b16 %v1993
    %v2111 = vunpack.c.l.b16 %v1996
    %v2112 = vunpack.c.l.b16 %v1999
    %v2113 = vunpack.c.l.b16 %v2001
    %v2114 = vunpack.c.l.b16 %v2003
    %v2115 = vunpack.c.l.b16 %v2006
    %v2116 = vunpack.c.l.b16 %v2009
    %v2117 = vunpack.c.l.b16 %v2012
    %v2118 = vunpack.c.l.b16 %v2014
    %v2119 = vunpack.c.l.b16 %v2016
    %v2120 = vunpack.c.l.b16 %v2019
    %v2121 = vunpack.c.l.b16 %v2022
    %v2122 = vunpack.c.l.b16 %v2025
    %v2123 = vunpack.c.l.b16 %v2027
    %v2124 = vunpack.c.l.b16 %v2029
    %v2125 = vunpack.c.l.b16 %v2032
    %v2126 = vunpack.c.l.b16 %v2035
    %v2127 = vunpack.c.l.b16 %v2038
    %v2128 = vunpack.c.l.b16 %v2040
    %v2129 = vunpack.c.l.b16 %v2042
    %v2130 = vunpack.c.l.b16 %v2045
    %v2131 = vunpack.c.l.b16 %v2048
    %v2132 = vunpack.c.l.b16 %v2051
    %v2133 = vunpack.c.l.b16 %v2053
    %v2134 = vld [vmem:[#allocation2] sm:$0xff]
    %v2135 = vld [vmem:[#allocation2 + $0x8] sm:$0xff]
    %v2136 = vld [vmem:[#allocation2 + $0x10] sm:$0xff]
    %v2137 = vld [vmem:[#allocation2 + $0x18] sm:$0xff]
    %v2138 = vld [vmem:[#allocation2 + $0x20] sm:$0xff]
    %v2139 = vld [vmem:[#allocation2 + $0x28] sm:$0xff]
    %v2140 = vld [vmem:[#allocation2 + $0x30] sm:$0xff]
    %v2141 = vld [vmem:[#allocation2 + $0x38] sm:$0xff]
    %v2142 = vld [vmem:[#allocation2 + $0x40] sm:$0xff]
    %v2143 = vld [vmem:[#allocation2 + $0x48] sm:$0xff]
    %v2144 = vld [vmem:[#allocation2 + $0x50] sm:$0xff]
    %v2145 = vld [vmem:[#allocation2 + $0x58] sm:$0xff]
    %v2146 = vld [vmem:[#allocation2 + $0x60] sm:$0xff]
    %v2147 = vld [vmem:[#allocation2 + $0x68] sm:$0xff]
    %v2148 = vld [vmem:[#allocation2 + $0x70] sm:$0xff]
    %v2149 = vld [vmem:[#allocation2 + $0x78] sm:$0xff]
    %v2150 = vld [vmem:[#allocation2 + $0x80] sm:$0xff]
    %v2151 = vld [vmem:[#allocation2 + $0x88] sm:$0xff]
    %v2152 = vld [vmem:[#allocation2 + $0x90] sm:$0xff]
    %v2153 = vld [vmem:[#allocation2 + $0x98] sm:$0xff]
    %v2154 = vld [vmem:[#allocation2 + $0xa0] sm:$0xff]
    %v2155 = vld [vmem:[#allocation2 + $0xa8] sm:$0xff]
    %v2156 = vld [vmem:[#allocation2 + $0xb0] sm:$0xff]
    %v2157 = vld [vmem:[#allocation2 + $0xb8] sm:$0xff]
    %v2158 = vld [vmem:[#allocation2 + $0xc0] sm:$0xff]
    %v2159 = vld [vmem:[#allocation2 + $0xc8] sm:$0xff]
    %v2160 = vld [vmem:[#allocation2 + $0xd0] sm:$0xff]
    %v2161 = vld [vmem:[#allocation2 + $0xd8] sm:$0xff]
    %v2162 = vld [vmem:[#allocation2 + $0xe0] sm:$0xff]
    %v2163 = vld [vmem:[#allocation2 + $0xe8] sm:$0xff]
    %v2164 = vld [vmem:[#allocation2 + $0xf0] sm:$0xff]
    %v2165 = vld [vmem:[#allocation2 + $0xf8] sm:$0xff]
    %v2166 = vld [vmem:[#allocation2 + $0x100] sm:$0xff]
    %v2167 = vld [vmem:[#allocation2 + $0x108] sm:$0xff]
    %v2168 = vld [vmem:[#allocation2 + $0x110] sm:$0xff]
    %v2169 = vld [vmem:[#allocation2 + $0x118] sm:$0xff]
    %v2170 = vld [vmem:[#allocation2 + $0x120] sm:$0xff]
    %v2171 = vld [vmem:[#allocation2 + $0x128] sm:$0xff]
    %v2172 = vld [vmem:[#allocation2 + $0x130] sm:$0xff]
    %v2173 = vld [vmem:[#allocation2 + $0x138] sm:$0xff]
    %v2174 = vld [vmem:[#allocation2 + $0x140] sm:$0xff]
    %v2175 = vld [vmem:[#allocation2 + $0x148] sm:$0xff]
    %v2176 = vld [vmem:[#allocation2 + $0x150] sm:$0xff]
    %v2177 = vld [vmem:[#allocation2 + $0x158] sm:$0xff]
    %v2178 = vld [vmem:[#allocation2 + $0x160] sm:$0xff]
    %v2179 = vld [vmem:[#allocation2 + $0x168] sm:$0xff]
    %v2180 = vld [vmem:[#allocation2 + $0x170] sm:$0xff]
    %v2181 = vld [vmem:[#allocation2 + $0x178] sm:$0xff]
    %v2182 = vld [vmem:[#allocation2 + $0x180] sm:$0xff]
    %v2183 = vld [vmem:[#allocation2 + $0x188] sm:$0xff]
    %v2184 = vld [vmem:[#allocation2 + $0x190] sm:$0xff]
    %v2185 = vld [vmem:[#allocation2 + $0x198] sm:$0xff]
    %v2186 = vld [vmem:[#allocation2 + $0x1a0] sm:$0xff]
    %v2187 = vld [vmem:[#allocation2 + $0x1a8] sm:$0xff]
    %v2188 = vld [vmem:[#allocation2 + $0x1b0] sm:$0xff]
    %v2189 = vld [vmem:[#allocation2 + $0x1b8] sm:$0xff]
    %v2190 = vld [vmem:[#allocation2 + $0x1c0] sm:$0xff]
    %v2191 = vld [vmem:[#allocation2 + $0x1c8] sm:$0xff]
    %v2192 = vld [vmem:[#allocation2 + $0x1d0] sm:$0xff]
    %v2193 = vld [vmem:[#allocation2 + $0x1d8] sm:$0xff]
    %v2194 = vld [vmem:[#allocation2 + $0x1e0] sm:$0xff]
    %v2195 = vld [vmem:[#allocation2 + $0x1e8] sm:$0xff]
    %v2196 = vld [vmem:[#allocation2 + $0x1f0] sm:$0xff]
    %v2197 = vld [vmem:[#allocation2 + $0x1f8] sm:$0xff]
    %v2198 = vld [vmem:[#allocation2 + $0x200] sm:$0xff]
    %v2199 = vld [vmem:[#allocation2 + $0x208] sm:$0xff]
    %v2200 = vld [vmem:[#allocation2 + $0x210] sm:$0xff]
    %v2201 = vld [vmem:[#allocation2 + $0x218] sm:$0xff]
    %v2202 = vld [vmem:[#allocation2 + $0x220] sm:$0xff]
    %v2203 = vld [vmem:[#allocation2 + $0x228] sm:$0xff]
    %v2204 = vld [vmem:[#allocation2 + $0x230] sm:$0xff]
    %v2205 = vld [vmem:[#allocation2 + $0x238] sm:$0xff]
    %v2206 = vld [vmem:[#allocation2 + $0x240] sm:$0xff]
    %v2207 = vld [vmem:[#allocation2 + $0x248] sm:$0xff]
    %v2208 = vld [vmem:[#allocation2 + $0x250] sm:$0xff]
    %v2209 = vld [vmem:[#allocation2 + $0x258] sm:$0xff]
    %v2210 = vld [vmem:[#allocation2 + $0x260] sm:$0xff]
    %v2211 = vld [vmem:[#allocation2 + $0x268] sm:$0xff]
    %v2212 = vld [vmem:[#allocation2 + $0x270] sm:$0xff]
    %v2213 = vld [vmem:[#allocation2 + $0x278] sm:$0xff]
    %v2214 = vpack.c.b16 %v2099, %v2094
    %v2215 = vpack.c.b16 %v2100, %v2095
    %v2216 = vpack.c.b16 %v2101, %v2096
    %v2217 = vpack.c.b16 %v2102, %v2097
    %v2218 = vpack.c.b16 %v2103, %v2098
    %v2219 = vpack.c.b16 %v2109, %v2104
    %v2220 = vpack.c.b16 %v2110, %v2105
    %v2221 = vpack.c.b16 %v2111, %v2106
    %v2222 = vpack.c.b16 %v2112, %v2107
    %v2223 = vpack.c.b16 %v2113, %v2108
    %v2224 = vpack.c.b16 %v2119, %v2114
    %v2225 = vpack.c.b16 %v2120, %v2115
    %v2226 = vpack.c.b16 %v2121, %v2116
    %v2227 = vpack.c.b16 %v2122, %v2117
    %v2228 = vpack.c.b16 %v2123, %v2118
    %v2229 = vpack.c.b16 %v2129, %v2124
    %v2230 = vpack.c.b16 %v2130, %v2125
    %v2231 = vpack.c.b16 %v2131, %v2126
    %v2232 = vpack.c.b16 %v2132, %v2127
    %v2233 = vpack.c.b16 %v2133, %v2128
    %v2334 = vunpack.c.l.b16 %v2134
    %v2335 = vunpack.c.h.b16 %v2134
    %v2336 = vunpack.c.l.b16 %v2135
    %v2337 = vunpack.c.h.b16 %v2135
    %v2338 = vunpack.c.l.b16 %v2136
    %v2339 = vunpack.c.h.b16 %v2136
    %v2340 = vunpack.c.l.b16 %v2137
    %v2341 = vunpack.c.h.b16 %v2137
    %v2342 = vunpack.c.l.b16 %v2138
    %v2343 = vunpack.c.h.b16 %v2138
    %v2344 = vunpack.c.l.b16 %v2139
    %v2345 = vunpack.c.h.b16 %v2139
    %v2346 = vunpack.c.l.b16 %v2140
    %v2347 = vunpack.c.h.b16 %v2140
    %v2348 = vunpack.c.l.b16 %v2141
    %v2349 = vunpack.c.h.b16 %v2141
    %v2350 = vunpack.c.l.b16 %v2142
    %v2351 = vunpack.c.h.b16 %v2142
    %v2352 = vunpack.c.l.b16 %v2143
    %v2353 = vunpack.c.h.b16 %v2143
    %v2354 = vunpack.c.l.b16 %v2144
    %v2355 = vunpack.c.h.b16 %v2144
    %v2356 = vunpack.c.l.b16 %v2145
    %v2357 = vunpack.c.h.b16 %v2145
    %v2358 = vunpack.c.l.b16 %v2146
    %v2359 = vunpack.c.h.b16 %v2146
    %v2360 = vunpack.c.l.b16 %v2147
    %v2361 = vunpack.c.h.b16 %v2147
    %v2362 = vunpack.c.l.b16 %v2148
    %v2363 = vunpack.c.h.b16 %v2148
    %v2364 = vunpack.c.l.b16 %v2149
    %v2365 = vunpack.c.h.b16 %v2149
    %v2366 = vunpack.c.l.b16 %v2150
    %v2367 = vunpack.c.h.b16 %v2150
    %v2368 = vunpack.c.l.b16 %v2151
    %v2369 = vunpack.c.h.b16 %v2151
    %v2370 = vunpack.c.l.b16 %v2152
    %v2371 = vunpack.c.h.b16 %v2152
    %v2372 = vunpack.c.l.b16 %v2153
    %v2373 = vunpack.c.h.b16 %v2153
    %v2374 = vunpack.c.l.b16 %v2154
    %v2375 = vunpack.c.h.b16 %v2154
    %v2376 = vunpack.c.l.b16 %v2155
    %v2377 = vunpack.c.h.b16 %v2155
    %v2378 = vunpack.c.l.b16 %v2156
    %v2379 = vunpack.c.h.b16 %v2156
    %v2380 = vunpack.c.l.b16 %v2157
    %v2381 = vunpack.c.h.b16 %v2157
    %v2382 = vunpack.c.l.b16 %v2158
    %v2383 = vunpack.c.h.b16 %v2158
    %v2384 = vunpack.c.l.b16 %v2159
    %v2385 = vunpack.c.h.b16 %v2159
    %v2386 = vunpack.c.l.b16 %v2160
    %v2387 = vunpack.c.h.b16 %v2160
    %v2388 = vunpack.c.l.b16 %v2161
    %v2389 = vunpack.c.h.b16 %v2161
    %v2390 = vunpack.c.l.b16 %v2162
    %v2391 = vunpack.c.h.b16 %v2162
    %v2392 = vunpack.c.l.b16 %v2163
    %v2393 = vunpack.c.h.b16 %v2163
    %v2394 = vunpack.c.l.b16 %v2164
    %v2395 = vunpack.c.h.b16 %v2164
    %v2396 = vunpack.c.l.b16 %v2165
    %v2397 = vunpack.c.h.b16 %v2165
    %v2398 = vunpack.c.l.b16 %v2166
    %v2399 = vunpack.c.h.b16 %v2166
    %v2400 = vunpack.c.l.b16 %v2167
    %v2401 = vunpack.c.h.b16 %v2167
    %v2402 = vunpack.c.l.b16 %v2168
    %v2403 = vunpack.c.h.b16 %v2168
    %v2404 = vunpack.c.l.b16 %v2169
    %v2405 = vunpack.c.h.b16 %v2169
    %v2406 = vunpack.c.l.b16 %v2170
    %v2407 = vunpack.c.h.b16 %v2170
    %v2408 = vunpack.c.l.b16 %v2171
    %v2409 = vunpack.c.h.b16 %v2171
    %v2410 = vunpack.c.l.b16 %v2172
    %v2411 = vunpack.c.h.b16 %v2172
    %v2412 = vunpack.c.l.b16 %v2173
    %v2413 = vunpack.c.h.b16 %v2173
    %v2414 = vunpack.c.l.b16 %v2174
    %v2415 = vunpack.c.h.b16 %v2174
    %v2416 = vunpack.c.l.b16 %v2175
    %v2417 = vunpack.c.h.b16 %v2175
    %v2418 = vunpack.c.l.b16 %v2176
    %v2419 = vunpack.c.h.b16 %v2176
    %v2420 = vunpack.c.l.b16 %v2177
    %v2421 = vunpack.c.h.b16 %v2177
    %v2422 = vunpack.c.l.b16 %v2178
    %v2423 = vunpack.c.h.b16 %v2178
    %v2424 = vunpack.c.l.b16 %v2179
    %v2425 = vunpack.c.h.b16 %v2179
    %v2426 = vunpack.c.l.b16 %v2180
    %v2427 = vunpack.c.h.b16 %v2180
    %v2428 = vunpack.c.l.b16 %v2181
    %v2429 = vunpack.c.h.b16 %v2181
    %v2430 = vunpack.c.l.b16 %v2182
    %v2431 = vunpack.c.h.b16 %v2182
    %v2432 = vunpack.c.l.b16 %v2183
    %v2433 = vunpack.c.h.b16 %v2183
    %v2434 = vunpack.c.l.b16 %v2184
    %v2435 = vunpack.c.h.b16 %v2184
    %v2436 = vunpack.c.l.b16 %v2185
    %v2437 = vunpack.c.h.b16 %v2185
    %v2438 = vunpack.c.l.b16 %v2186
    %v2439 = vunpack.c.h.b16 %v2186
    %v2440 = vunpack.c.l.b16 %v2187
    %v2441 = vunpack.c.h.b16 %v2187
    %v2442 = vunpack.c.l.b16 %v2188
    %v2443 = vunpack.c.h.b16 %v2188
    %v2444 = vunpack.c.l.b16 %v2189
    %v2445 = vunpack.c.h.b16 %v2189
    %v2446 = vunpack.c.l.b16 %v2190
    %v2447 = vunpack.c.h.b16 %v2190
    %v2448 = vunpack.c.l.b16 %v2191
    %v2449 = vunpack.c.h.b16 %v2191
    %v2450 = vunpack.c.l.b16 %v2192
    %v2451 = vunpack.c.h.b16 %v2192
    %v2452 = vunpack.c.l.b16 %v2193
    %v2453 = vunpack.c.h.b16 %v2193
    %v2454 = vunpack.c.l.b16 %v2194
    %v2455 = vunpack.c.h.b16 %v2194
    %v2456 = vunpack.c.l.b16 %v2195
    %v2457 = vunpack.c.h.b16 %v2195
    %v2458 = vunpack.c.l.b16 %v2196
    %v2459 = vunpack.c.h.b16 %v2196
    %v2460 = vunpack.c.l.b16 %v2197
    %v2461 = vunpack.c.h.b16 %v2197
    %v2462 = vunpack.c.l.b16 %v2198
    %v2463 = vunpack.c.h.b16 %v2198
    %v2464 = vunpack.c.l.b16 %v2199
    %v2465 = vunpack.c.h.b16 %v2199
    %v2466 = vunpack.c.l.b16 %v2200
    %v2467 = vunpack.c.h.b16 %v2200
    %v2468 = vunpack.c.l.b16 %v2201
    %v2469 = vunpack.c.h.b16 %v2201
    %v2470 = vunpack.c.l.b16 %v2202
    %v2471 = vunpack.c.h.b16 %v2202
    %v2472 = vunpack.c.l.b16 %v2203
    %v2473 = vunpack.c.h.b16 %v2203
    %v2474 = vunpack.c.l.b16 %v2204
    %v2475 = vunpack.c.h.b16 %v2204
    %v2476 = vunpack.c.l.b16 %v2205
    %v2477 = vunpack.c.h.b16 %v2205
    %v2478 = vunpack.c.l.b16 %v2206
    %v2479 = vunpack.c.h.b16 %v2206
    %v2480 = vunpack.c.l.b16 %v2207
    %v2481 = vunpack.c.h.b16 %v2207
    %v2482 = vunpack.c.l.b16 %v2208
    %v2483 = vunpack.c.h.b16 %v2208
    %v2484 = vunpack.c.l.b16 %v2209
    %v2485 = vunpack.c.h.b16 %v2209
    %v2486 = vunpack.c.l.b16 %v2210
    %v2487 = vunpack.c.h.b16 %v2210
    %v2488 = vunpack.c.l.b16 %v2211
    %v2489 = vunpack.c.h.b16 %v2211
    %v2490 = vunpack.c.l.b16 %v2212
    %v2491 = vunpack.c.h.b16 %v2212
    %v2492 = vunpack.c.l.b16 %v2213
    %v2493 = vunpack.c.h.b16 %v2213
    %v2494 = vpack.c.b16 %v2336, %v2334
    %v2495 = vpack.c.b16 %v2337, %v2335
    %v2496 = vpack.c.b16 %v2340, %v2338
    %v2497 = vpack.c.b16 %v2341, %v2339
    %v2498 = vpack.c.b16 %v2344, %v2342
    %v2499 = vpack.c.b16 %v2345, %v2343
    %v2500 = vpack.c.b16 %v2348, %v2346
    %v2501 = vpack.c.b16 %v2349, %v2347
    %v2502 = vpack.c.b16 %v2352, %v2350
    %v2503 = vpack.c.b16 %v2353, %v2351
    %v2504 = vpack.c.b16 %v2356, %v2354
    %v2505 = vpack.c.b16 %v2357, %v2355
    %v2506 = vpack.c.b16 %v2360, %v2358
    %v2507 = vpack.c.b16 %v2361, %v2359
    %v2508 = vpack.c.b16 %v2364, %v2362
    %v2509 = vpack.c.b16 %v2365, %v2363
    %v2510 = vpack.c.b16 %v2368, %v2366
    %v2511 = vpack.c.b16 %v2369, %v2367
    %v2512 = vpack.c.b16 %v2372, %v2370
    %v2513 = vpack.c.b16 %v2373, %v2371
    %v2514 = vpack.c.b16 %v2376, %v2374
    %v2515 = vpack.c.b16 %v2377, %v2375
    %v2516 = vpack.c.b16 %v2380, %v2378
    %v2517 = vpack.c.b16 %v2381, %v2379
    %v2518 = vpack.c.b16 %v2384, %v2382
    %v2519 = vpack.c.b16 %v2385, %v2383
    %v2520 = vpack.c.b16 %v2388, %v2386
    %v2521 = vpack.c.b16 %v2389, %v2387
    %v2522 = vpack.c.b16 %v2392, %v2390
    %v2523 = vpack.c.b16 %v2393, %v2391
    %v2524 = vpack.c.b16 %v2396, %v2394
    %v2525 = vpack.c.b16 %v2397, %v2395
    %v2526 = vpack.c.b16 %v2400, %v2398
    %v2527 = vpack.c.b16 %v2401, %v2399
    %v2528 = vpack.c.b16 %v2404, %v2402
    %v2529 = vpack.c.b16 %v2405, %v2403
    %v2530 = vpack.c.b16 %v2408, %v2406
    %v2531 = vpack.c.b16 %v2409, %v2407
    %v2532 = vpack.c.b16 %v2412, %v2410
    %v2533 = vpack.c.b16 %v2413, %v2411
    %v2534 = vpack.c.b16 %v2416, %v2414
    %v2535 = vpack.c.b16 %v2417, %v2415
    %v2536 = vpack.c.b16 %v2420, %v2418
    %v2537 = vpack.c.b16 %v2421, %v2419
    %v2538 = vpack.c.b16 %v2424, %v2422
    %v2539 = vpack.c.b16 %v2425, %v2423
    %v2540 = vpack.c.b16 %v2428, %v2426
    %v2541 = vpack.c.b16 %v2429, %v2427
    %v2542 = vpack.c.b16 %v2432, %v2430
    %v2543 = vpack.c.b16 %v2433, %v2431
    %v2544 = vpack.c.b16 %v2436, %v2434
    %v2545 = vpack.c.b16 %v2437, %v2435
    %v2546 = vpack.c.b16 %v2440, %v2438
    %v2547 = vpack.c.b16 %v2441, %v2439
    %v2548 = vpack.c.b16 %v2444, %v2442
    %v2549 = vpack.c.b16 %v2445, %v2443
    %v2550 = vpack.c.b16 %v2448, %v2446
    %v2551 = vpack.c.b16 %v2449, %v2447
    %v2552 = vpack.c.b16 %v2452, %v2450
    %v2553 = vpack.c.b16 %v2453, %v2451
    %v2554 = vpack.c.b16 %v2456, %v2454
    %v2555 = vpack.c.b16 %v2457, %v2455
    %v2556 = vpack.c.b16 %v2460, %v2458
    %v2557 = vpack.c.b16 %v2461, %v2459
    %v2558 = vpack.c.b16 %v2464, %v2462
    %v2559 = vpack.c.b16 %v2465, %v2463
    %v2560 = vpack.c.b16 %v2468, %v2466
    %v2561 = vpack.c.b16 %v2469, %v2467
    %v2562 = vpack.c.b16 %v2472, %v2470
    %v2563 = vpack.c.b16 %v2473, %v2471
    %v2564 = vpack.c.b16 %v2476, %v2474
    %v2565 = vpack.c.b16 %v2477, %v2475
    %v2566 = vpack.c.b16 %v2480, %v2478
    %v2567 = vpack.c.b16 %v2481, %v2479
    %v2568 = vpack.c.b16 %v2484, %v2482
    %v2569 = vpack.c.b16 %v2485, %v2483
    %v2570 = vpack.c.b16 %v2488, %v2486
    %v2571 = vpack.c.b16 %v2489, %v2487
    %v2572 = vpack.c.b16 %v2492, %v2490
    %v2573 = vpack.c.b16 %v2493, %v2491
    %2654 = vmatprep.subr.bf16.mxu0 %v2495
    %2655 = vmatpush1.bf16.msra.mxu0 %v2494
    %2656 = vmatprep.subr.bf16.mxu0 %v2497
    %2657 = vmatpush1.bf16.msra.mxu0 %v2496
    %2658 = vmatprep.subr.bf16.mxu0 %v2499
    %2659 = vmatpush1.bf16.msra.mxu0 %v2498
    %2660 = vmatprep.subr.bf16.mxu0 %v2501
    %2661 = vmatpush1.bf16.msra.mxu0 %v2500
    %2662 = vmatprep.subr.bf16.mxu0 %v2503
    %2663 = vmatpush1.bf16.msra.mxu0 %v2502
    %2664 = vmatprep.subr.bf16.mxu0 %v2505
    %2665 = vmatpush1.bf16.msra.mxu0 %v2504
    %2666 = vmatprep.subr.bf16.mxu0 %v2507
    %2667 = vmatpush1.bf16.msra.mxu0 %v2506
    %2668 = vmatprep.subr.bf16.mxu0 %v2509
    %2669 = vmatpush1.bf16.msra.mxu0 %v2508
    %2670 = vmatprep.subr.bf16.mxu0 %v2511
    %2671 = vmatpush1.bf16.msra.mxu0 %v2510
    %2672 = vmatprep.subr.bf16.mxu0 %v2513
    %2673 = vmatpush1.bf16.msra.mxu0 %v2512
    %2674 = vmatprep.subr.bf16.mxu0 %v2515
    %2675 = vmatpush1.bf16.msra.mxu0 %v2514
    %2676 = vmatprep.subr.bf16.mxu0 %v2517
    %2677 = vmatpush1.bf16.msra.mxu0 %v2516
    %2678 = vmatprep.subr.bf16.mxu0 %v2519
    %2679 = vmatpush1.bf16.msra.mxu0 %v2518
    %2680 = vmatprep.subr.bf16.mxu0 %v2521
    %2681 = vmatpush1.bf16.msra.mxu0 %v2520
    %2682 = vmatprep.subr.bf16.mxu0 %v2523
    %2683 = vmatpush1.bf16.msra.mxu0 %v2522
    %2684 = vmatprep.subr.bf16.mxu0 %v2525
    %2685 = vmatpush1.bf16.msra.mxu0 %v2524
    %2686 = vmatprep.mubr.bf16.mxu0 %v2215
    %2687 = vmatmul.mubr.bf16.gmra.mrb[0].mxu0 %v2214
    %v2688 = vpop.f32.mrb[0].mxu0
    %v2689 = vadd.f32 0.0, %v2688
    %v2690 = vpop.f32.mrb[0].mxu0
    %v2691 = vadd.f32 0.0, %v2690
    %v2692 = vpop.f32.mrb[0].mxu0
    %v2693 = vadd.f32 0.0, %v2692
    %v2694 = vpop.f32.mrb[0].mxu0
    %v2695 = vadd.f32 0.0, %v2694
    %2696 = vmatprep.mubr.bf16.mxu0 %v2220
    %2697 = vmatmul.mubr.bf16.gmra.mrb[0].mxu0 %v2219
    %v2698 = vpop.f32.mrb[0].mxu0
    %v2699 = vadd.f32 0.0, %v2698
    %v2700 = vpop.f32.mrb[0].mxu0
    %v2701 = vadd.f32 0.0, %v2700
    %v2702 = vpop.f32.mrb[0].mxu0
    %v2703 = vadd.f32 0.0, %v2702
    %v2704 = vpop.f32.mrb[0].mxu0
    %v2705 = vadd.f32 0.0, %v2704
    %2706 = vmatprep.mubr.bf16.mxu0 %v2225
    %2707 = vmatmul.mubr.bf16.gmra.mrb[0].mxu0 %v2224
    %v2708 = vpop.f32.mrb[0].mxu0
    %v2709 = vadd.f32 0.0, %v2708
    %v2710 = vpop.f32.mrb[0].mxu0
    %v2711 = vadd.f32 0.0, %v2710
    %v2712 = vpop.f32.mrb[0].mxu0
    %v2713 = vadd.f32 0.0, %v2712
    %v2714 = vpop.f32.mrb[0].mxu0
    %v2715 = vadd.f32 0.0, %v2714
    %2716 = vmatprep.mubr.bf16.mxu0 %v2230
    %2717 = vmatmul.mubr.bf16.gmra.mrb[0].mxu0 %v2229
    %v2718 = vpop.f32.mrb[0].mxu0
    %v2719 = vadd.f32 0.0, %v2718
    %v2720 = vpop.f32.mrb[0].mxu0
    %v2721 = vadd.f32 0.0, %v2720
    %v2722 = vpop.f32.mrb[0].mxu0
    %v2723 = vadd.f32 0.0, %v2722
    %v2724 = vpop.f32.mrb[0].mxu0
    %v2725 = vadd.f32 0.0, %v2724
    %2726 = vdwg.mxu0
    %2727 = vmatprep.subr.bf16.mxu0 %v2527
    %2728 = vmatpush1.bf16.msra.mxu0 %v2526
    %2729 = vmatprep.subr.bf16.mxu0 %v2529
    %2730 = vmatpush1.bf16.msra.mxu0 %v2528
    %2731 = vmatprep.subr.bf16.mxu0 %v2531
    %2732 = vmatpush1.bf16.msra.mxu0 %v2530
    %2733 = vmatprep.subr.bf16.mxu0 %v2533
    %2734 = vmatpush1.bf16.msra.mxu0 %v2532
    %2735 = vmatprep.subr.bf16.mxu0 %v2535
    %2736 = vmatpush1.bf16.msra.mxu0 %v2534
    %2737 = vmatprep.subr.bf16.mxu0 %v2537
    %2738 = vmatpush1.bf16.msra.mxu0 %v2536
    %2739 = vmatprep.subr.bf16.mxu0 %v2539
    %2740 = vmatpush1.bf16.msra.mxu0 %v2538
    %2741 = vmatprep.subr.bf16.mxu0 %v2541
    %2742 = vmatpush1.bf16.msra.mxu0 %v2540
    %2743 = vmatprep.subr.bf16.mxu0 %v2543
    %2744 = vmatpush1.bf16.msra.mxu0 %v2542
    %2745 = vmatprep.subr.bf16.mxu0 %v2545
    %2746 = vmatpush1.bf16.msra.mxu0 %v2544
    %2747 = vmatprep.subr.bf16.mxu0 %v2547
    %2748 = vmatpush1.bf16.msra.mxu0 %v2546
    %2749 = vmatprep.subr.bf16.mxu0 %v2549
    %2750 = vmatpush1.bf16.msra.mxu0 %v2548
    %2751 = vmatprep.subr.bf16.mxu0 %v2551
    %2752 = vmatpush1.bf16.msra.mxu0 %v2550
    %2753 = vmatprep.subr.bf16.mxu0 %v2553
    %2754 = vmatpush1.bf16.msra.mxu0 %v2552
    %2755 = vmatprep.subr.bf16.mxu0 %v2555
    %2756 = vmatpush1.bf16.msra.mxu0 %v2554
    %2757 = vmatprep.subr.bf16.mxu0 %v2557
    %2758 = vmatpush1.bf16.msra.mxu0 %v2556
    %2759 = vmatprep.mubr.bf16.mxu0 %v2217
    %2760 = vmatmul.mubr.bf16.gmra.mrb[0].mxu0 %v2216
    %v2761 = vpop.f32.mrb[0].mxu0
    %v2762 = vadd.f32 %v2689, %v2761
    %v2763 = vpop.f32.mrb[0].mxu0
    %v2764 = vadd.f32 %v2691, %v2763
    %v2765 = vpop.f32.mrb[0].mxu0
    %v2766 = vadd.f32 %v2693, %v2765
    %v2767 = vpop.f32.mrb[0].mxu0
    %v2768 = vadd.f32 %v2695, %v2767
    %2769 = vmatprep.mubr.bf16.mxu0 %v2222
    %2770 = vmatmul.mubr.bf16.gmra.mrb[0].mxu0 %v2221
    %v2771 = vpop.f32.mrb[0].mxu0
    %v2772 = vadd.f32 %v2699, %v2771
    %v2773 = vpop.f32.mrb[0].mxu0
    %v2774 = vadd.f32 %v2701, %v2773
    %v2775 = vpop.f32.mrb[0].mxu0
    %v2776 = vadd.f32 %v2703, %v2775
    %v2777 = vpop.f32.mrb[0].mxu0
    %v2778 = vadd.f32 %v2705, %v2777
    %2779 = vmatprep.mubr.bf16.mxu0 %v2227
    %2780 = vmatmul.mubr.bf16.gmra.mrb[0].mxu0 %v2226
    %v2781 = vpop.f32.mrb[0].mxu0
    %v2782 = vadd.f32 %v2709, %v2781
    %v2783 = vpop.f32.mrb[0].mxu0
    %v2784 = vadd.f32 %v2711, %v2783
    %v2785 = vpop.f32.mrb[0].mxu0
    %v2786 = vadd.f32 %v2713, %v2785
    %v2787 = vpop.f32.mrb[0].mxu0
    %v2788 = vadd.f32 %v2715, %v2787
    %2789 = vmatprep.mubr.bf16.mxu0 %v2232
    %2790 = vmatmul.mubr.bf16.gmra.mrb[0].mxu0 %v2231
    %v2791 = vpop.f32.mrb[0].mxu0
    %v2792 = vadd.f32 %v2719, %v2791
    %v2793 = vpop.f32.mrb[0].mxu0
    %v2794 = vadd.f32 %v2721, %v2793
    %v2795 = vpop.f32.mrb[0].mxu0
    %v2796 = vadd.f32 %v2723, %v2795
    %v2797 = vpop.f32.mrb[0].mxu0
    %v2798 = vadd.f32 %v2725, %v2797
    %2799 = vdwg.mxu0
    %2800 = vmatprep.subr.bf16.mxu0 %v2559
    %2801 = vmatpush1.bf16.msra.mxu0 %v2558
    %2802 = vmatprep.subr.bf16.mxu0 %v2561
    %2803 = vmatpush1.bf16.msra.mxu0 %v2560
    %2804 = vmatprep.subr.bf16.mxu0 %v2563
    %2805 = vmatpush1.bf16.msra.mxu0 %v2562
    %2806 = vmatprep.subr.bf16.mxu0 %v2565
    %2807 = vmatpush1.bf16.msra.mxu0 %v2564
    %2808 = vmatprep.subr.bf16.mxu0 %v2567
    %2809 = vmatpush1.bf16.msra.mxu0 %v2566
    %2810 = vmatprep.subr.bf16.mxu0 %v2569
    %2811 = vmatpush1.bf16.msra.mxu0 %v2568
    %2812 = vmatprep.subr.bf16.mxu0 %v2571
    %2813 = vmatpush1.bf16.msra.mxu0 %v2570
    %2814 = vmatprep.subr.bf16.mxu0 %v2573
    %2815 = vmatpush1.bf16.msra.mxu0 %v2572
    %2816 = vmatprep.subr.bf16.mxu0 0
    %2817 = vmatpush1.bf16.msra.mxu0 0
    %2818 = vmatprep.subr.bf16.mxu0 0
    %2819 = vmatpush1.bf16.msra.mxu0 0
    %2820 = vmatprep.subr.bf16.mxu0 0
    %2821 = vmatpush1.bf16.msra.mxu0 0
    %2822 = vmatprep.subr.bf16.mxu0 0
    %2823 = vmatpush1.bf16.msra.mxu0 0
    %2824 = vmatprep.subr.bf16.mxu0 0
    %2825 = vmatpush1.bf16.msra.mxu0 0
    %2826 = vmatprep.subr.bf16.mxu0 0
    %2827 = vmatpush1.bf16.msra.mxu0 0
    %2828 = vmatprep.subr.bf16.mxu0 0
    %2829 = vmatpush1.bf16.msra.mxu0 0
    %2830 = vmatprep.subr.bf16.mxu0 0
    %2831 = vmatpush1.bf16.msra.mxu0 0
    %2832 = vmatprep.mubr.bf16.mxu0 0
    %2833 = vmatmul.mubr.bf16.gmra.mrb[0].mxu0 %v2218
    %v2834 = vpop.f32.mrb[0].mxu0
    %v2835 = vadd.f32 %v2762, %v2834
    %v2836 = vpop.f32.mrb[0].mxu0
    %v2837 = vadd.f32 %v2764, %v2836
    %v2838 = vpop.f32.mrb[0].mxu0
    %v2839 = vadd.f32 %v2766, %v2838
    %v2840 = vpop.f32.mrb[0].mxu0
    %v2841 = vadd.f32 %v2768, %v2840
    %2842 = vmatprep.mubr.bf16.mxu0 0
    %2843 = vmatmul.mubr.bf16.gmra.mrb[0].mxu0 %v2223
    %v2844 = vpop.f32.mrb[0].mxu0
    %v2845 = vadd.f32 %v2772, %v2844
    %v2846 = vpop.f32.mrb[0].mxu0
    %v2847 = vadd.f32 %v2774, %v2846
    %v2848 = vpop.f32.mrb[0].mxu0
    %v2849 = vadd.f32 %v2776, %v2848
    %v2850 = vpop.f32.mrb[0].mxu0
    %v2851 = vadd.f32 %v2778, %v2850
    %2852 = vmatprep.mubr.bf16.mxu0 0
    %2853 = vmatmul.mubr.bf16.gmra.mrb[0].mxu0 %v2228
    %v2854 = vpop.f32.mrb[0].mxu0
    %v2855 = vadd.f32 %v2782, %v2854
    %v2856 = vpop.f32.mrb[0].mxu0
    %v2857 = vadd.f32 %v2784, %v2856
    %v2858 = vpop.f32.mrb[0].mxu0
    %v2859 = vadd.f32 %v2786, %v2858
    %v2860 = vpop.f32.mrb[0].mxu0
    %v2861 = vadd.f32 %v2788, %v2860
    %2862 = vmatprep.mubr.bf16.mxu0 0
    %2863 = vmatmul.mubr.bf16.gmra.mrb[0].mxu0 %v2233
    %v2864 = vpop.f32.mrb[0].mxu0
    %v2865 = vadd.f32 %v2792, %v2864
    %v2866 = vpop.f32.mrb[0].mxu0
    %v2867 = vadd.f32 %v2794, %v2866
    %v2868 = vpop.f32.mrb[0].mxu0
    %v2869 = vadd.f32 %v2796, %v2868
    %v2870 = vpop.f32.mrb[0].mxu0
    %v2871 = vadd.f32 %v2798, %v2870
    %2872 = vdwg.mxu0
    %v2873 = vmax.f32 %v2835, %v2837
    %v2874 = vmax.f32 %v2839, %v2841
    %v2875 = vmax.f32 %v2845, %v2847
    %v2876 = vmax.f32 %v2849, %v2851
    %v2877 = vmax.f32 %v2855, %v2857
    %v2878 = vmax.f32 %v2859, %v2861
    %v2879 = vmax.f32 %v2865, %v2867
    %v2880 = vmax.f32 %v2869, %v2871
    %v2889 = vrot.slane %v2873, 4
    %v2890 = vrot.slane %v2874, 4
    %v2891 = vrot.slane %v2875, 4
    %v2892 = vrot.slane %v2876, 4
    %v2893 = vrot.slane %v2877, 4
    %v2894 = vrot.slane %v2878, 4
    %v2895 = vrot.slane %v2879, 4
    %v2896 = vrot.slane %v2880, 4
    %v2905 = vmax.f32 %v2873, %v2889
    %v2906 = vmax.f32 %v2874, %v2890
    %v2907 = vmax.f32 %v2875, %v2891
    %v2908 = vmax.f32 %v2876, %v2892
    %v2909 = vmax.f32 %v2877, %v2893
    %v2910 = vmax.f32 %v2878, %v2894
    %v2911 = vmax.f32 %v2879, %v2895
    %v2912 = vmax.f32 %v2880, %v2896
    %v2913 = vld [vmem:[%s4] sm:$0x1]
    %v2915 = vlaneseq
    %v2916 = vshrl.u32 %v2915, 7
    %v2917 = vsub.s32 0, %v2916
    %v2918 = vrot.slane %v2913, %v2917
    %v2920 = vadd.f32 %v2905, %v2918
    %v2921 = vadd.f32 %v2906, %v2918
    %v2922 = vadd.f32 %v2907, %v2918
    %v2923 = vadd.f32 %v2908, %v2918
    %v2924 = vadd.f32 %v2909, %v2918
    %v2925 = vadd.f32 %v2910, %v2918
    %v2926 = vadd.f32 %v2911, %v2918
    %v2927 = vadd.f32 %v2912, %v2918
    %v2928 = vmax.f32 %v2920, 0.0
    %v2929 = vmax.f32 %v2921, 0.0
    %v2930 = vmax.f32 %v2922, 0.0
    %v2931 = vmax.f32 %v2923, 0.0
    %v2932 = vmax.f32 %v2924, 0.0
    %v2933 = vmax.f32 %v2925, 0.0
    %v2934 = vmax.f32 %v2926, 0.0
    %v2935 = vmax.f32 %v2927, 0.0
    %v2936 = vpack.c.bf16 %v2928, %v2928
    %v2937 = vpack.c.bf16 %v2929, %v2929
    %v2938 = vpack.c.bf16 %v2930, %v2930
    %v2939 = vpack.c.bf16 %v2931, %v2931
    %v2940 = vpack.c.bf16 %v2932, %v2932
    %v2941 = vpack.c.bf16 %v2933, %v2933
    %v2942 = vpack.c.bf16 %v2934, %v2934
    %v2943 = vpack.c.bf16 %v2935, %v2935
    %v2952 = vunpack.c.l.b16 %v2936
    %v2953 = vunpack.c.l.b16 %v2937
    %v2954 = vunpack.c.l.b16 %v2938
    %v2955 = vunpack.c.l.b16 %v2939
    %v2956 = vunpack.c.l.b16 %v2940
    %v2957 = vunpack.c.l.b16 %v2941
    %v2958 = vunpack.c.l.b16 %v2942
    %v2959 = vunpack.c.l.b16 %v2943
    %v2960 = vrot.slane %v2953, 7
    %vm2961 = vcmask 1041409
    %v2962 = vsel %vm2961, %v2960, %v2952
    %v2963 = vrot.slane %v2954, 6
    %vm2964 = vcmask 1042434
    %v2965 = vsel %vm2964, %v2963, %v2962
    %v2966 = vrot.slane %v2955, 5
    %vm2967 = vcmask 1043459
    %v2968 = vsel %vm2967, %v2966, %v2965
    %v2969 = vrot.slane %v2956, 4
    %vm2970 = vcmask 1044484
    %v2971 = vsel %vm2970, %v2969, %v2968
    %v2972 = vrot.slane %v2957, 3
    %vm2973 = vcmask 1045509
    %v2974 = vsel %vm2973, %v2972, %v2971
    %v2975 = vrot.slane %v2958, 2
    %vm2976 = vcmask 1046534
    %v2977 = vsel %vm2976, %v2975, %v2974
    %v2978 = vrot.slane %v2959, 1
    %vm2979 = vcmask 1047559
    %v2980 = vsel %vm2979, %v2978, %v2977
    %v2981 = vpack.c.b16 %v2980, %v2980
    %v2983 = vrot.slane %v2952, 1
    %v2984 = vsel %vm2961, %v2953, %v2983
    %v2985 = vrot.slane %v2954, 7
    %v2986 = vsel %vm2964, %v2985, %v2984
    %v2987 = vrot.slane %v2955, 6
    %v2988 = vsel %vm2967, %v2987, %v2986
    %v2989 = vrot.slane %v2956, 5
    %v2990 = vsel %vm2970, %v2989, %v2988
    %v2991 = vrot.slane %v2957, 4
    %v2992 = vsel %vm2973, %v2991, %v2990
    %v2993 = vrot.slane %v2958, 3
    %v2994 = vsel %vm2976, %v2993, %v2992
    %v2995 = vrot.slane %v2959, 2
    %v2996 = vsel %vm2979, %v2995, %v2994
    %v2997 = vpack.c.b16 %v2996, %v2996
    %v2999 = vrot.slane %v2952, 2
    %v3000 = vrot.slane %v2953, 1
    %v3001 = vsel %vm2961, %v3000, %v2999
    %v3002 = vsel %vm2964, %v2954, %v3001
    %v3003 = vrot.slane %v2955, 7
    %v3004 = vsel %vm2967, %v3003, %v3002
    %v3005 = vrot.slane %v2956, 6
    %v3006 = vsel %vm2970, %v3005, %v3004
    %v3007 = vrot.slane %v2957, 5
    %v3008 = vsel %vm2973, %v3007, %v3006
    %v3009 = vrot.slane %v2958, 4
    %v3010 = vsel %vm2976, %v3009, %v3008
    %v3011 = vrot.slane %v2959, 3
    %v3012 = vsel %vm2979, %v3011, %v3010
    %v3013 = vpack.c.b16 %v3012, %v3012
    %v3015 = vrot.slane %v2952, 3
    %v3016 = vrot.slane %v2953, 2
    %v3017 = vsel %vm2961, %v3016, %v3015
    %v3018 = vrot.slane %v2954, 1
    %v3019 = vsel %vm2964, %v3018, %v3017
    %v3020 = vsel %vm2967, %v2955, %v3019
    %v3021 = vrot.slane %v2956, 7
    %v3022 = vsel %vm2970, %v3021, %v3020
    %v3023 = vrot.slane %v2957, 6
    %v3024 = vsel %vm2973, %v3023, %v3022
    %v3025 = vrot.slane %v2958, 5
    %v3026 = vsel %vm2976, %v3025, %v3024
    %v3027 = vrot.slane %v2959, 4
    %v3028 = vsel %vm2979, %v3027, %v3026
    %v3029 = vpack.c.b16 %v3028, %v3028
    %v3031 = vld [vmem:[%s5] sm:$0xf]
    %v3032 = vld [vmem:[%s5 + $0x4] sm:$0xf]
    %v3033 = vld [vmem:[%s5 + $0x8] sm:$0xf]
    %v3034 = vld [vmem:[%s5 + $0xc] sm:$0xf]
    %v3035 = vld [vmem:[%s5 + $0x10] sm:$0xf]
    %v3036 = vld [vmem:[%s5 + $0x14] sm:$0xf]
    %v3037 = vld [vmem:[%s5 + $0x18] sm:$0xf]
    %v3038 = vld [vmem:[%s5 + $0x1c] sm:$0xf]
    %v3039 = vld [vmem:[%s5 + $0x20] sm:$0xf]
    %v3040 = vld [vmem:[%s5 + $0x24] sm:$0xf]
    %v3041 = vld [vmem:[%s5 + $0x28] sm:$0xf]
    %v3042 = vld [vmem:[%s5 + $0x2c] sm:$0xf]
    %v3043 = vld [vmem:[%s5 + $0x30] sm:$0xf]
    %v3044 = vld [vmem:[%s5 + $0x34] sm:$0xf]
    %v3045 = vld [vmem:[%s5 + $0x38] sm:$0xf]
    %v3046 = vld [vmem:[%s5 + $0x3c] sm:$0xf]
    %v3047 = vld [vmem:[%s5 + $0x40] sm:$0xf]
    %v3048 = vld [vmem:[%s5 + $0x44] sm:$0xf]
    %v3049 = vld [vmem:[%s5 + $0x48] sm:$0xf]
    %v3050 = vld [vmem:[%s5 + $0x4c] sm:$0xf]
    %v3051 = vld [vmem:[%s5 + $0x50] sm:$0xf]
    %v3052 = vld [vmem:[%s5 + $0x54] sm:$0xf]
    %v3053 = vld [vmem:[%s5 + $0x58] sm:$0xf]
    %v3054 = vld [vmem:[%s5 + $0x5c] sm:$0xf]
    %v3055 = vld [vmem:[%s5 + $0x60] sm:$0xf]
    %v3056 = vld [vmem:[%s5 + $0x64] sm:$0xf]
    %v3057 = vld [vmem:[%s5 + $0x68] sm:$0xf]
    %v3058 = vld [vmem:[%s5 + $0x6c] sm:$0xf]
    %v3059 = vld [vmem:[%s5 + $0x70] sm:$0xf]
    %v3060 = vld [vmem:[%s5 + $0x74] sm:$0xf]
    %v3061 = vld [vmem:[%s5 + $0x78] sm:$0xf]
    %v3062 = vld [vmem:[%s5 + $0x7c] sm:$0xf]
    %v3063 = vld [vmem:[%s5 + $0x80] sm:$0xf]
    %v3064 = vld [vmem:[%s5 + $0x84] sm:$0xf]
    %v3065 = vld [vmem:[%s5 + $0x88] sm:$0xf]
    %v3066 = vld [vmem:[%s5 + $0x8c] sm:$0xf]
    %v3067 = vld [vmem:[%s5 + $0x90] sm:$0xf]
    %v3068 = vld [vmem:[%s5 + $0x94] sm:$0xf]
    %v3069 = vld [vmem:[%s5 + $0x98] sm:$0xf]
    %v3070 = vld [vmem:[%s5 + $0x9c] sm:$0xf]
    %v3071 = vld [vmem:[%s5 + $0xa0] sm:$0xf]
    %v3072 = vld [vmem:[%s5 + $0xa4] sm:$0xf]
    %v3073 = vld [vmem:[%s5 + $0xa8] sm:$0xf]
    %v3074 = vld [vmem:[%s5 + $0xac] sm:$0xf]
    %v3075 = vld [vmem:[%s5 + $0xb0] sm:$0xf]
    %v3076 = vld [vmem:[%s5 + $0xb4] sm:$0xf]
    %v3077 = vld [vmem:[%s5 + $0xb8] sm:$0xf]
    %v3078 = vld [vmem:[%s5 + $0xbc] sm:$0xf]
    %v3079 = vld [vmem:[%s5 + $0xc0] sm:$0xf]
    %v3080 = vld [vmem:[%s5 + $0xc4] sm:$0xf]
    %v3081 = vld [vmem:[%s5 + $0xc8] sm:$0xf]
    %v3082 = vld [vmem:[%s5 + $0xcc] sm:$0xf]
    %v3083 = vld [vmem:[%s5 + $0xd0] sm:$0xf]
    %v3084 = vld [vmem:[%s5 + $0xd4] sm:$0xf]
    %v3085 = vld [vmem:[%s5 + $0xd8] sm:$0xf]
    %v3086 = vld [vmem:[%s5 + $0xdc] sm:$0xf]
    %v3087 = vld [vmem:[%s5 + $0xe0] sm:$0xf]
    %v3088 = vld [vmem:[%s5 + $0xe4] sm:$0xf]
    %v3089 = vld [vmem:[%s5 + $0xe8] sm:$0xf]
    %v3090 = vld [vmem:[%s5 + $0xec] sm:$0xf]
    %v3091 = vld [vmem:[%s5 + $0xf0] sm:$0xf]
    %v3092 = vld [vmem:[%s5 + $0xf4] sm:$0xf]
    %v3093 = vld [vmem:[%s5 + $0xf8] sm:$0xf]
    %v3094 = vld [vmem:[%s5 + $0xfc] sm:$0xf]
    %v3095 = vld [vmem:[%s6] sm:$0x1]
    %v3097 = vlaneseq
    %v3098 = vshrl.u32 %v3097, 7
    %v3099 = vsub.s32 0, %v3098
    %v3100 = vrot.slane %v3095, %v3099
    %v3166 = vunpack.c.l.b16 %v3031
    %v3167 = vunpack.c.l.b16 %v3032
    %v3168 = vunpack.c.l.b16 %v3033
    %v3169 = vunpack.c.l.b16 %v3034
    %v3170 = vunpack.c.l.b16 %v3035
    %v3171 = vunpack.c.l.b16 %v3036
    %v3172 = vunpack.c.l.b16 %v3037
    %v3173 = vunpack.c.l.b16 %v3038
    %v3174 = vunpack.c.l.b16 %v3039
    %v3175 = vunpack.c.l.b16 %v3040
    %v3176 = vunpack.c.l.b16 %v3041
    %v3177 = vunpack.c.l.b16 %v3042
    %v3178 = vunpack.c.l.b16 %v3043
    %v3179 = vunpack.c.l.b16 %v3044
    %v3180 = vunpack.c.l.b16 %v3045
    %v3181 = vunpack.c.l.b16 %v3046
    %v3182 = vunpack.c.l.b16 %v3047
    %v3183 = vunpack.c.l.b16 %v3048
    %v3184 = vunpack.c.l.b16 %v3049
    %v3185 = vunpack.c.l.b16 %v3050
    %v3186 = vunpack.c.l.b16 %v3051
    %v3187 = vunpack.c.l.b16 %v3052
    %v3188 = vunpack.c.l.b16 %v3053
    %v3189 = vunpack.c.l.b16 %v3054
    %v3190 = vunpack.c.l.b16 %v3055
    %v3191 = vunpack.c.l.b16 %v3056
    %v3192 = vunpack.c.l.b16 %v3057
    %v3193 = vunpack.c.l.b16 %v3058
    %v3194 = vunpack.c.l.b16 %v3059
    %v3195 = vunpack.c.l.b16 %v3060
    %v3196 = vunpack.c.l.b16 %v3061
    %v3197 = vunpack.c.l.b16 %v3062
    %v3198 = vunpack.c.l.b16 %v3063
    %v3199 = vunpack.c.l.b16 %v3064
    %v3200 = vunpack.c.l.b16 %v3065
    %v3201 = vunpack.c.l.b16 %v3066
    %v3202 = vunpack.c.l.b16 %v3067
    %v3203 = vunpack.c.l.b16 %v3068
    %v3204 = vunpack.c.l.b16 %v3069
    %v3205 = vunpack.c.l.b16 %v3070
    %v3206 = vunpack.c.l.b16 %v3071
    %v3207 = vunpack.c.l.b16 %v3072
    %v3208 = vunpack.c.l.b16 %v3073
    %v3209 = vunpack.c.l.b16 %v3074
    %v3210 = vunpack.c.l.b16 %v3075
    %v3211 = vunpack.c.l.b16 %v3076
    %v3212 = vunpack.c.l.b16 %v3077
    %v3213 = vunpack.c.l.b16 %v3078
    %v3214 = vunpack.c.l.b16 %v3079
    %v3215 = vunpack.c.l.b16 %v3080
    %v3216 = vunpack.c.l.b16 %v3081
    %v3217 = vunpack.c.l.b16 %v3082
    %v3218 = vunpack.c.l.b16 %v3083
    %v3219 = vunpack.c.l.b16 %v3084
    %v3220 = vunpack.c.l.b16 %v3085
    %v3221 = vunpack.c.l.b16 %v3086
    %v3222 = vunpack.c.l.b16 %v3087
    %v3223 = vunpack.c.l.b16 %v3088
    %v3224 = vunpack.c.l.b16 %v3089
    %v3225 = vunpack.c.l.b16 %v3090
    %v3226 = vunpack.c.l.b16 %v3091
    %v3227 = vunpack.c.l.b16 %v3092
    %v3228 = vunpack.c.l.b16 %v3093
    %v3229 = vunpack.c.l.b16 %v3094
    %v3230 = vpack.c.b16 %v3167, %v3166
    %v3231 = vpack.c.b16 %v3169, %v3168
    %v3232 = vpack.c.b16 %v3171, %v3170
    %v3233 = vpack.c.b16 %v3173, %v3172
    %v3234 = vpack.c.b16 %v3175, %v3174
    %v3235 = vpack.c.b16 %v3177, %v3176
    %v3236 = vpack.c.b16 %v3179, %v3178
    %v3237 = vpack.c.b16 %v3181, %v3180
    %v3238 = vpack.c.b16 %v3183, %v3182
    %v3239 = vpack.c.b16 %v3185, %v3184
    %v3240 = vpack.c.b16 %v3187, %v3186
    %v3241 = vpack.c.b16 %v3189, %v3188
    %v3242 = vpack.c.b16 %v3191, %v3190
    %v3243 = vpack.c.b16 %v3193, %v3192
    %v3244 = vpack.c.b16 %v3195, %v3194
    %v3245 = vpack.c.b16 %v3197, %v3196
    %v3246 = vpack.c.b16 %v3199, %v3198
    %v3247 = vpack.c.b16 %v3201, %v3200
    %v3248 = vpack.c.b16 %v3203, %v3202
    %v3249 = vpack.c.b16 %v3205, %v3204
    %v3250 = vpack.c.b16 %v3207, %v3206
    %v3251 = vpack.c.b16 %v3209, %v3208
    %v3252 = vpack.c.b16 %v3211, %v3210
    %v3253 = vpack.c.b16 %v3213, %v3212
    %v3254 = vpack.c.b16 %v3215, %v3214
    %v3255 = vpack.c.b16 %v3217, %v3216
    %v3256 = vpack.c.b16 %v3219, %v3218
    %v3257 = vpack.c.b16 %v3221, %v3220
    %v3258 = vpack.c.b16 %v3223, %v3222
    %v3259 = vpack.c.b16 %v3225, %v3224
    %v3260 = vpack.c.b16 %v3227, %v3226
    %v3261 = vpack.c.b16 %v3229, %v3228
    %3294 = vmatprep.subr.bf16.mxu0 0
    %3295 = vmatpush1.bf16.msra.mxu0 %v3230
    %3296 = vmatprep.subr.bf16.mxu0 0
    %3297 = vmatpush1.bf16.msra.mxu0 %v3231
    %3298 = vmatprep.subr.bf16.mxu0 0
    %3299 = vmatpush1.bf16.msra.mxu0 %v3232
    %3300 = vmatprep.subr.bf16.mxu0 0
    %3301 = vmatpush1.bf16.msra.mxu0 %v3233
    %3302 = vmatprep.subr.bf16.mxu0 0
    %3303 = vmatpush1.bf16.msra.mxu0 %v3234
    %3304 = vmatprep.subr.bf16.mxu0 0
    %3305 = vmatpush1.bf16.msra.mxu0 %v3235
    %3306 = vmatprep.subr.bf16.mxu0 0
    %3307 = vmatpush1.bf16.msra.mxu0 %v3236
    %3308 = vmatprep.subr.bf16.mxu0 0
    %3309 = vmatpush1.bf16.msra.mxu0 %v3237
    %3310 = vmatprep.subr.bf16.mxu0 0
    %3311 = vmatpush1.bf16.msra.mxu0 %v3238
    %3312 = vmatprep.subr.bf16.mxu0 0
    %3313 = vmatpush1.bf16.msra.mxu0 %v3239
    %3314 = vmatprep.subr.bf16.mxu0 0
    %3315 = vmatpush1.bf16.msra.mxu0 %v3240
    %3316 = vmatprep.subr.bf16.mxu0 0
    %3317 = vmatpush1.bf16.msra.mxu0 %v3241
    %3318 = vmatprep.subr.bf16.mxu0 0
    %3319 = vmatpush1.bf16.msra.mxu0 %v3242
    %3320 = vmatprep.subr.bf16.mxu0 0
    %3321 = vmatpush1.bf16.msra.mxu0 %v3243
    %3322 = vmatprep.subr.bf16.mxu0 0
    %3323 = vmatpush1.bf16.msra.mxu0 %v3244
    %3324 = vmatprep.subr.bf16.mxu0 0
    %3325 = vmatpush1.bf16.msra.mxu0 %v3245
    %3326 = vmatprep.mubr.bf16.mxu0 %v2997
    %3327 = vmatmul.mubr.bf16.gmra.mrb[0].mxu0 %v2981
    %v3328 = vpop.f32.mrb[0].mxu0
    %v3329 = vadd.f32 %v3100, %v3328
    %v3330 = vpop.f32.mrb[0].mxu0
    %v3331 = vpop.f32.mrb[0].mxu0
    %v3332 = vpop.f32.mrb[0].mxu0
    %3333 = vdwg.mxu0
    %3334 = vmatprep.subr.bf16.mxu0 0
    %3335 = vmatpush1.bf16.msra.mxu0 %v3246
    %3336 = vmatprep.subr.bf16.mxu0 0
    %3337 = vmatpush1.bf16.msra.mxu0 %v3247
    %3338 = vmatprep.subr.bf16.mxu0 0
    %3339 = vmatpush1.bf16.msra.mxu0 %v3248
    %3340 = vmatprep.subr.bf16.mxu0 0
    %3341 = vmatpush1.bf16.msra.mxu0 %v3249
    %3342 = vmatprep.subr.bf16.mxu0 0
    %3343 = vmatpush1.bf16.msra.mxu0 %v3250
    %3344 = vmatprep.subr.bf16.mxu0 0
    %3345 = vmatpush1.bf16.msra.mxu0 %v3251
    %3346 = vmatprep.subr.bf16.mxu0 0
    %3347 = vmatpush1.bf16.msra.mxu0 %v3252
    %3348 = vmatprep.subr.bf16.mxu0 0
    %3349 = vmatpush1.bf16.msra.mxu0 %v3253
    %3350 = vmatprep.subr.bf16.mxu0 0
    %3351 = vmatpush1.bf16.msra.mxu0 %v3254
    %3352 = vmatprep.subr.bf16.mxu0 0
    %3353 = vmatpush1.bf16.msra.mxu0 %v3255
    %3354 = vmatprep.subr.bf16.mxu0 0
    %3355 = vmatpush1.bf16.msra.mxu0 %v3256
    %3356 = vmatprep.subr.bf16.mxu0 0
    %3357 = vmatpush1.bf16.msra.mxu0 %v3257
    %3358 = vmatprep.subr.bf16.mxu0 0
    %3359 = vmatpush1.bf16.msra.mxu0 %v3258
    %3360 = vmatprep.subr.bf16.mxu0 0
    %3361 = vmatpush1.bf16.msra.mxu0 %v3259
    %3362 = vmatprep.subr.bf16.mxu0 0
    %3363 = vmatpush1.bf16.msra.mxu0 %v3260
    %3364 = vmatprep.subr.bf16.mxu0 0
    %3365 = vmatpush1.bf16.msra.mxu0 %v3261
    %3366 = vmatprep.mubr.bf16.mxu0 %v3029
    %3367 = vmatmul.mubr.bf16.gmra.mrb[0].mxu0 %v3013
    %v3368 = vpop.f32.mrb[0].mxu0
    %v3369 = vadd.f32 %v3329, %v3368
    %v3370 = vpop.f32.mrb[0].mxu0
    %v3371 = vpop.f32.mrb[0].mxu0
    %v3372 = vpop.f32.mrb[0].mxu0
    %3373 = vdwg.mxu0
    %v3374 = vmax.f32 %v3369, 0.0
    %v3375 = vpack.c.bf16 %v3374, %v3374
    %v3376 = vld [vmem:[#allocation4] sm:$0xf]
    %v3377 = vld [vmem:[#allocation4 + $0x4] sm:$0xf]
    %v3378 = vld [vmem:[#allocation4 + $0x8] sm:$0xf]
    %v3379 = vld [vmem:[#allocation4 + $0xc] sm:$0xf]
    %v3380 = vld [vmem:[#allocation4 + $0x10] sm:$0xf]
    %v3381 = vld [vmem:[#allocation4 + $0x14] sm:$0xf]
    %v3382 = vld [vmem:[#allocation4 + $0x18] sm:$0xf]
    %v3383 = vld [vmem:[#allocation4 + $0x1c] sm:$0xf]
    %v3384 = vld [vmem:[#allocation4 + $0x20] sm:$0xf]
    %v3385 = vld [vmem:[#allocation4 + $0x24] sm:$0xf]
    %v3386 = vld [vmem:[#allocation4 + $0x28] sm:$0xf]
    %v3387 = vld [vmem:[#allocation4 + $0x2c] sm:$0xf]
    %v3388 = vld [vmem:[#allocation4 + $0x30] sm:$0xf]
    %v3389 = vld [vmem:[#allocation4 + $0x34] sm:$0xf]
    %v3390 = vld [vmem:[#allocation4 + $0x38] sm:$0xf]
    %v3391 = vld [vmem:[#allocation4 + $0x3c] sm:$0xf]
    %v3392 = vld [vmem:[%s8] sm:$0x1]
    %v3394 = vlaneseq
    %v3395 = vshrl.u32 %v3394, 7
    %v3396 = vsub.s32 0, %v3395
    %v3397 = vrot.slane %v3392, %v3396
    %v3415 = vunpack.c.l.b16 %v3376
    %v3416 = vunpack.c.l.b16 %v3377
    %v3417 = vunpack.c.l.b16 %v3378
    %v3418 = vunpack.c.l.b16 %v3379
    %v3419 = vunpack.c.l.b16 %v3380
    %v3420 = vunpack.c.l.b16 %v3381
    %v3421 = vunpack.c.l.b16 %v3382
    %v3422 = vunpack.c.l.b16 %v3383
    %v3423 = vunpack.c.l.b16 %v3384
    %v3424 = vunpack.c.l.b16 %v3385
    %v3425 = vunpack.c.l.b16 %v3386
    %v3426 = vunpack.c.l.b16 %v3387
    %v3427 = vunpack.c.l.b16 %v3388
    %v3428 = vunpack.c.l.b16 %v3389
    %v3429 = vunpack.c.l.b16 %v3390
    %v3430 = vunpack.c.l.b16 %v3391
    %v3431 = vpack.c.b16 %v3416, %v3415
    %v3432 = vpack.c.b16 %v3418, %v3417
    %v3433 = vpack.c.b16 %v3420, %v3419
    %v3434 = vpack.c.b16 %v3422, %v3421
    %v3435 = vpack.c.b16 %v3424, %v3423
    %v3436 = vpack.c.b16 %v3426, %v3425
    %v3437 = vpack.c.b16 %v3428, %v3427
    %v3438 = vpack.c.b16 %v3430, %v3429
    %3447 = vmatprep.subr.bf16.mxu0 0
    %3448 = vmatpush1.bf16.msra.mxu0 %v3431
    %3449 = vmatprep.subr.bf16.mxu0 0
    %3450 = vmatpush1.bf16.msra.mxu0 %v3432
    %3451 = vmatprep.subr.bf16.mxu0 0
    %3452 = vmatpush1.bf16.msra.mxu0 %v3433
    %3453 = vmatprep.subr.bf16.mxu0 0
    %3454 = vmatpush1.bf16.msra.mxu0 %v3434
    %3455 = vmatprep.subr.bf16.mxu0 0
    %3456 = vmatpush1.bf16.msra.mxu0 %v3435
    %3457 = vmatprep.subr.bf16.mxu0 0
    %3458 = vmatpush1.bf16.msra.mxu0 %v3436
    %3459 = vmatprep.subr.bf16.mxu0 0
    %3460 = vmatpush1.bf16.msra.mxu0 %v3437
    %3461 = vmatprep.subr.bf16.mxu0 0
    %3462 = vmatpush1.bf16.msra.mxu0 %v3438
    %3463 = vmatprep.subr.bf16.mxu0 0
    %3464 = vmatpush1.bf16.msra.mxu0 0
    %3465 = vmatprep.subr.bf16.mxu0 0
    %3466 = vmatpush1.bf16.msra.mxu0 0
    %3467 = vmatprep.subr.bf16.mxu0 0
    %3468 = vmatpush1.bf16.msra.mxu0 0
    %3469 = vmatprep.subr.bf16.mxu0 0
    %3470 = vmatpush1.bf16.msra.mxu0 0
    %3471 = vmatprep.subr.bf16.mxu0 0
    %3472 = vmatpush1.bf16.msra.mxu0 0
    %3473 = vmatprep.subr.bf16.mxu0 0
    %3474 = vmatpush1.bf16.msra.mxu0 0
    %3475 = vmatprep.subr.bf16.mxu0 0
    %3476 = vmatpush1.bf16.msra.mxu0 0
    %3477 = vmatprep.subr.bf16.mxu0 0
    %3478 = vmatpush1.bf16.msra.mxu0 0
    %3479 = vmatprep.mubr.bf16.mxu0 0
    %3480 = vmatmul.mubr.bf16.gmra.mrb[0].mxu0 %v3375
    %v3481 = vpop.f32.mrb[0].mxu0
    %v3482 = vadd.f32 %v3397, %v3481
    %v3483 = vpop.f32.mrb[0].mxu0
    %v3484 = vpop.f32.mrb[0].mxu0
    %v3485 = vpop.f32.mrb[0].mxu0
    %3486 = vdwg.mxu0
    %3487 = vmax.xlane.f32.xlu0 %v3482
    %v3488 = vpop.xlane.xlu0 %3487
    %v3489 = vsub.f32 %v3482, %v3488
    %v3490 = vmul.f32 %v3489, 1.442695
    %v3491 = vpow.pop %v3490
    %3492 = vadd.xlane.f32.xlu0 %v3491
    %v3493 = vpop.xlane.xlu0 %3492
    %v3494 = vrcp.pop %v3493
    %v3495 = vmul.f32 %v3491, %v3494
    %3496 = vst [vmem:[%s9] sm:$0xff] %v3495
    // Predicated region
    $region46: #{net_forward.1} parent=1 // pred_check
      _
    $region47: #{net_forward.1} parent=1 // pred_check_branch
      %3498 = sbr.rel (0) target = $region49
    $region48: #{net_forward.1} parent=1 // pred_region
      _
    $region49: #{net_forward.1} parent=1 // pred_fallthru
      _
    // Predicated region
    $region50: #{net_forward.1} parent=1 // pred_check
      _
    $region51: #{net_forward.1} parent=1 // pred_check_branch
      %3500 = sbr.rel (0) target = $region53
    $region52: #{net_forward.1} parent=1 // pred_region
      _
    $region53: #{net_forward.1} parent=1 // pred_fallthru
      _
    %3501 = vsyncpa [#allocation3], 1
    %3502 = vsyncpa [#allocation5], 1

</llo_original>
